<compile_context>
chip_gen: v6e
topology: v6e:2x2x1
jax: 0.10.0
libtpu: 0.0.40
codegen_flags: <defaults>
</compile_context>

<pallas_src>
import functools

import jax
import jax.numpy as jnp
from jax.experimental import pallas as pl
from jax.experimental.pallas import tpu as pltpu


def _nonlocal_attn_kernel(x_q_ref, x_kv_ref,
                          wkv_ref, bkv_ref, wt_ref, bt_ref, bo_ref,
                          o_ref,
                          phi_sc, gp_sc, *, c_i):
    # x_q_ref : (1, C, TQ)      f32  query tile of the image
    # x_kv_ref: (1, C, HW)      bf16 full image (key/value side), re-DMA'd per n
    # wkv_ref : (C_i + C, C)    bf16 stacked [W_phi ; W_out @ W_g]
    # bkv_ref : (C_i + C, 1)    f32  stacked [b_phi ; W_out @ b_g]
    # wt_ref  : (C_i, C)        bf16 W_theta * scale
    # bt_ref  : (C_i, 1)        f32  b_theta * scale
    # bo_ref  : (C, 1)          f32  conv_out bias
    # o_ref   : (1, C, TQ)
    # phi_sc  : (C_i, HW) bf16  VMEM scratch, persistent across q tiles
    # gp_sc   : (C,   HW) bf16  VMEM scratch, persistent across q tiles
    q = pl.program_id(1)

    @pl.when(q == 0)
    def _():
        # One stacked projection for the whole image: [phi(x); W_out @ g(x)].
        x_kv = x_kv_ref[0]                                              # (C, HW) bf16
        pg = jnp.dot(wkv_ref[...], x_kv,
                     preferred_element_type=jnp.float32) + bkv_ref[...]  # (C_i+C, HW)
        phi_sc[...] = pg[:c_i].astype(jnp.bfloat16)                     # (C_i, HW)
        gp_sc[...] = pg[c_i:].astype(jnp.bfloat16)                      # (C,   HW)

    x_q = x_q_ref[0]                                                    # (C, TQ) f32

    # theta(x) for this query tile (softmax scale already folded into wt/bt).
    theta = jnp.dot(wt_ref[...], x_q.astype(jnp.bfloat16),
                    preferred_element_type=jnp.float32) + bt_ref[...]   # (C_i, TQ)
    theta_bf = theta.astype(jnp.bfloat16)

    # scores[q, k] = sum_ci theta[ci, q] * phi[ci, k]  (contract sublane dim;
    # bf16 operands so any layout shuffle moves half the data).
    scores = jax.lax.dot_general(theta_bf, phi_sc[...],
                                 (((0,), (0,)), ((), ())),
                                 preferred_element_type=jnp.float32)    # (TQ, HW)

    # softmax over the key axis (f32).
    # TODO(synk): on v6e/v7x a bf16 exp would halve EUP time; kept f32 for
    # numerics and v5e compatibility.
    m = jnp.max(scores, axis=-1, keepdims=True)
    e = jnp.exp(scores - m)
    denom = jnp.sum(e, axis=-1, keepdims=True)
    p = (e * pl.reciprocal(denom, approx=True)).astype(jnp.bfloat16)    # (TQ, HW)

    # Fused attn@g + conv_out:
    #   out[c, q] = sum_k (W_out @ g)[c, k] * p[q, k] + b_out[c]
    out = jax.lax.dot_general(gp_sc[...], p, (((1,), (1,)), ((), ())),
                              preferred_element_type=jnp.float32)       # (C, TQ)
    out = out + bo_ref[...]

    # Residual in full precision.
    o_ref[0] = (x_q.astype(jnp.float32) + out).astype(o_ref.dtype)


def non_local_2d(x, w_g, b_g, w_theta, b_theta, w_phi, b_phi, w_out, b_out,
                 *, use_scale=True, q_tile=None):
    """x: (N, C, H, W); g/theta/phi weights: (C_i, C, 1, 1); conv_out: (C, C_i, 1, 1)."""
    N, C, H, W = x.shape
    HW = H * W
    C_i = w_g.shape[0]

    # Lane-dense, VMEM-aware query tile: a multiple of 128 dividing HW, capped
    # at 256 for large images (softmax intermediates ~10*TQ*HW bytes).
    if q_tile is None:
        cap = 256 if HW >= 8192 else 512
        q_tile = HW
        for cand in (512, 384, 256, 128):
            if cand <= cap and cand < HW and HW % cand == 0:
                q_tile = cand
                break
    assert HW % q_tile == 0
    n_q = HW // q_tile

    scale = float(1.0 / (C_i ** 0.5)) if use_scale else 1.0

    # NCHW -> (N, C, HW): pure reshape, no HBM transpose.
    xr = x.reshape(N, C, HW)
    # Key/value side as a separate bf16 operand (halves its VMEM block + DMA).
    x_kv = xr.astype(jnp.bfloat16)

    f32 = jnp.float32
    bf = jnp.bfloat16

    wg = w_g.reshape(C_i, C).astype(f32)
    wt = w_theta.reshape(C_i, C).astype(f32) * scale          # fold softmax scale
    wp = w_phi.reshape(C_i, C).astype(f32)
    wo = w_out.reshape(C, C_i).astype(f32)

    # conv_out folded into g:  W_out @ (W_g x + b_g) = (W_out W_g) x + W_out b_g
    w_gout = wo @ wg                                            # (C, C)
    b_gout = wo @ b_g.reshape(C_i).astype(f32)                  # (C,)

    w_kv = jnp.concatenate([wp, w_gout], axis=0).astype(bf)     # (C_i + C, C)
    b_kv = jnp.concatenate([b_phi.reshape(C_i).astype(f32), b_gout],
                           axis=0).reshape(C_i + C, 1)          # (C_i + C, 1)
    wt_bf = wt.astype(bf)                                       # (C_i, C)
    bt_s = (b_theta.reshape(C_i).astype(f32) * scale).reshape(C_i, 1)
    bo = b_out.reshape(C).astype(f32).reshape(C, 1)

    kernel = functools.partial(_nonlocal_attn_kernel, c_i=C_i)

    itemsize = x.dtype.itemsize

    # Explicit VMEM budget (single-buffered bf16 kv block + scratch + the
    # larger of the first-step projection temp and the softmax temps + tiles).
    kv_block = C * HW * 2
    q_blocks = 2 * 2 * (C * q_tile * itemsize)                  # in+out, double-buffered
    scratch = (C_i + C) * HW * 2
    proj_tmp = (C_i + C) * HW * 4
    softmax_tmp = q_tile * HW * (4 + 4 + 2)
    weights_b = ((C_i + C) * C + C_i * C) * 2 + (C_i + C + C_i + C) * 4
    budget = kv_block + q_blocks + scratch + max(proj_tmp, softmax_tmp) + weights_b
    vmem_limit = int(min(max(int(budget * 1.5), 32 * 1024 * 1024),
                         128 * 1024 * 1024))

    flops = int(
        2 * N * (C_i + C) * C * HW        # stacked phi / W_out@g projection (per image)
        + 2 * N * C_i * C * HW            # theta over all query tiles
        + 2 * N * HW * HW * C_i           # theta^T @ phi
        + 2 * N * HW * HW * C             # fused (W_out@g) . p^T
    )
    transcendentals = int(N * HW * HW)    # softmax exp
    bytes_accessed = int(
        xr.size * itemsize                # x read as query tiles
        + x_kv.size * 2                   # x read as bf16 kv image
        + xr.size * itemsize              # output write
        + (w_kv.size + wt_bf.size) * 2
        + (b_kv.size + bt_s.size + bo.size) * 4
    )
    cost = pl.CostEstimate(flops=flops, transcendentals=transcendentals,
                           bytes_accessed=bytes_accessed)

    out = pl.pallas_call(
        kernel,
        out_shape=jax.ShapeDtypeStruct((N, C, HW), x.dtype),
        grid_spec=pltpu.PrefetchScalarGridSpec(
            num_scalar_prefetch=0,
            grid=(N, n_q),
            in_specs=[
                # x query tile (f32, for theta + residual)
                pl.BlockSpec((1, C, q_tile), lambda n, q: (n, 0, q)),
                # x key/value image (bf16); index_map ignores q -> re-DMA'd only
                # per batch element, so single buffering suffices.
                pl.BlockSpec((1, C, HW), lambda n, q: (n, 0, 0),
                             pipeline_mode=pl.Buffered(1)),
                pl.BlockSpec((C_i + C, C), lambda n, q: (0, 0)),   # stacked W
                pl.BlockSpec((C_i + C, 1), lambda n, q: (0, 0)),   # stacked b
                pl.BlockSpec((C_i, C), lambda n, q: (0, 0)),       # W_theta*scale
                pl.BlockSpec((C_i, 1), lambda n, q: (0, 0)),       # b_theta*scale
                pl.BlockSpec((C, 1), lambda n, q: (0, 0)),         # b_out
            ],
            out_specs=pl.BlockSpec((1, C, q_tile), lambda n, q: (n, 0, q)),
            scratch_shapes=[
                pltpu.VMEM((C_i, HW), jnp.bfloat16),   # phi(x), whole image
                pltpu.VMEM((C, HW), jnp.bfloat16),     # W_out @ g(x), whole image
            ],
        ),
        compiler_params=pltpu.CompilerParams(
            dimension_semantics=("parallel", "arbitrary"),
            vmem_limit_bytes=vmem_limit),
        cost_estimate=cost,
    )(xr, x_kv, w_kv, b_kv, wt_bf, bt_s, bo)

    # (N, C, HW) -> NCHW: pure reshape, no transpose.
    return out.reshape(N, C, H, W)


def _reference(x, w_g, b_g, w_t, b_t, w_p, b_p, w_o, b_o, *, use_scale=True):
    """Pure-JAX f32 replica of the PyTorch embedded_gaussian forward."""
    n, c, h, w = x.shape
    ci = w_g.shape[0]
    xf = x.reshape(n, c, h * w)

    def conv1x1(z, wt, bt):
        wm = wt.reshape(wt.shape[0], wt.shape[1])
        return jnp.einsum('oc,ncs->nos', wm, z) + bt.reshape(1, -1, 1)

    g_x = conv1x1(xf, w_g, b_g).transpose(0, 2, 1)         # (n, HW, C_i)
    theta_x = conv1x1(xf, w_t, b_t).transpose(0, 2, 1)     # (n, HW, C_i)
    phi_x = conv1x1(xf, w_p, b_p)                          # (n, C_i, HW)
    pw = jnp.einsum('nqc,nck->nqk', theta_x, phi_x)
    if use_scale:
        pw = pw / (ci ** 0.5)
    pw = jax.nn.softmax(pw, axis=-1)
    y = jnp.einsum('nqk,nkc->nqc', pw, g_x)                # (n, HW, C_i)
    y = y.transpose(0, 2, 1)                               # (n, C_i, HW)
    out = jnp.einsum('oc,ncs->nos', w_o.reshape(c, ci), y) + b_o.reshape(1, -1, 1)
    return x + out.reshape(n, c, h, w)


if __name__ == "__main__":
    key = jax.random.PRNGKey(0)
    ks = jax.random.split(key, 9)

    # Small but lane/sublane-friendly shapes consistent with the module.
    N, C, H, W = 2, 64, 16, 16           # HW = 256 -> two query tiles of 128
    reduction = 2
    C_i = max(C // reduction, 1)

    std_in = 1.0 / (C ** 0.5)
    std_out = 1.0 / (C_i ** 0.5)
    x = jax.random.normal(ks[0], (N, C, H, W), dtype=jnp.float32)
    w_g = jax.random.normal(ks[1], (C_i, C, 1, 1), dtype=jnp.float32) * std_in
    b_g = jax.random.normal(ks[2], (C_i,), dtype=jnp.float32) * 0.1
    w_theta = jax.random.normal(ks[3], (C_i, C, 1, 1), dtype=jnp.float32) * std_in
    b_theta = jax.random.normal(ks[4], (C_i,), dtype=jnp.float32) * 0.1
    w_phi = jax.random.normal(ks[5], (C_i, C, 1, 1), dtype=jnp.float32) * std_in
    b_phi = jax.random.normal(ks[6], (C_i,), dtype=jnp.float32) * 0.1
    w_out = jax.random.normal(ks[7], (C, C_i, 1, 1), dtype=jnp.float32) * std_out
    b_out = jax.random.normal(ks[8], (C,), dtype=jnp.float32) * 0.1

    out = non_local_2d(x, w_g, b_g, w_theta, b_theta, w_phi, b_phi,
                       w_out, b_out, use_scale=True, q_tile=128)
    out = jax.block_until_ready(out)

    ref = _reference(x, w_g, b_g, w_theta, b_theta, w_phi, b_phi,
                     w_out, b_out, use_scale=True)
    assert out.shape == (N, C, H, W)
    # Kernel runs its matmuls in bf16 (f32 accumulation) with bf16 softmax
    # probabilities; compare against the f32 reference with a tolerance that
    # covers bf16 rounding but not bugs.
    assert jnp.allclose(out, ref, atol=5e-2, rtol=5e-2), "mismatch vs reference"

    print("KERNEL_OK")
</pallas_src>

<mosaic_0001>
module attributes {stable_mosaic.version = 11 : i64} {
  func.func @_nonlocal_attn_kernel(%arg0: i32, %arg1: i32, %arg2: memref<1x64x128xf32, #tpu.memory_space<vmem>>, %arg3: memref<1x64x256xbf16, #tpu.memory_space<vmem>>, %arg4: memref<96x64xbf16, #tpu.memory_space<vmem>>, %arg5: memref<96x1xf32, #tpu.memory_space<vmem>>, %arg6: memref<32x64xbf16, #tpu.memory_space<vmem>>, %arg7: memref<32x1xf32, #tpu.memory_space<vmem>>, %arg8: memref<64x1xf32, #tpu.memory_space<vmem>>, %arg9: memref<1x64x128xf32, #tpu.memory_space<vmem>>, %arg10: memref<32x256xbf16, #tpu.memory_space<vmem>>, %arg11: memref<64x256xbf16, #tpu.memory_space<vmem>>) attributes {dimension_semantics = [#tpu.dimension_semantics<parallel>, #tpu.dimension_semantics<arbitrary>], iteration_bounds = array<i64: 2, 2>, scalar_prefetch = 0 : i64, scratch_operands = 2 : i64, tpu.core_type = #tpu.core_type<tc>, window_params = [{transform_indices = @transform_0, window_bounds = array<i64: 1, 64, 128>}, {pipeline_mode = #tpu.pipeline_mode<synchronous>, transform_indices = @transform_1, window_bounds = array<i64: 1, 64, 256>}, {pipeline_mode = #tpu.pipeline_mode<synchronous>, transform_indices = @transform_2, window_bounds = array<i64: 96, 64>}, {pipeline_mode = #tpu.pipeline_mode<synchronous>, transform_indices = @transform_3, window_bounds = array<i64: 96, 1>}, {pipeline_mode = #tpu.pipeline_mode<synchronous>, transform_indices = @transform_4, window_bounds = array<i64: 32, 64>}, {pipeline_mode = #tpu.pipeline_mode<synchronous>, transform_indices = @transform_5, window_bounds = array<i64: 32, 1>}, {pipeline_mode = #tpu.pipeline_mode<synchronous>, transform_indices = @transform_6, window_bounds = array<i64: 64, 1>}, {transform_indices = @transform_7, window_bounds = array<i64: 1, 64, 128>}]} {
    %c0_i32 = arith.constant 0 : i32
    %0 = arith.cmpi eq, %arg1, %c0_i32 : i32
    %1 = arith.extui %0 : i1 to i32
    %c0_i32_0 = arith.constant 0 : i32
    %2 = arith.cmpi ne, %1, %c0_i32_0 : i32
    scf.if %2 {
      %c0_20 = arith.constant 0 : index
      %c0_21 = arith.constant 0 : index
      %c0_22 = arith.constant 0 : index
      %34 = vector.load %arg3[%c0_20, %c0_21, %c0_22] : memref<1x64x256xbf16, #tpu.memory_space<vmem>>, vector<1x64x256xbf16>
      %35 = vector.shape_cast %34 : vector<1x64x256xbf16> to vector<64x256xbf16>
      %c0_23 = arith.constant 0 : index
      %c0_24 = arith.constant 0 : index
      %36 = vector.load %arg4[%c0_23, %c0_24] : memref<96x64xbf16, #tpu.memory_space<vmem>>, vector<96x64xbf16>
      %cst_25 = arith.constant dense<0.000000e+00> : vector<96x256xf32>
      %37 = tpu.matmul %36, %35, %cst_25 {dimension_numbers = #tpu.dot_dimension_numbers<[1], [0], [0], [1], [0, 0, 1, 1], [], []>} : vector<96x64xbf16>, vector<64x256xbf16>, vector<96x256xf32> -> vector<96x256xf32>
      %c0_26 = arith.constant 0 : index
      %c0_27 = arith.constant 0 : index
      %38 = vector.load %arg5[%c0_26, %c0_27] : memref<96x1xf32, #tpu.memory_space<vmem>>, vector<96x1xf32>
      %39 = vector.broadcast %38 : vector<96x1xf32> to vector<96x256xf32>
      %40 = arith.addf %37, %39 : vector<96x256xf32>
      %41 = vector.extract_strided_slice %40 {offsets = [0, 0], sizes = [32, 256], strides = [1, 1]} : vector<96x256xf32> to vector<32x256xf32>
      %42 = arith.truncf %41 : vector<32x256xf32> to vector<32x256xbf16>
      %c0_28 = arith.constant 0 : index
      %c0_29 = arith.constant 0 : index
      %43 = vector.load %arg10[%c0_28, %c0_29] : memref<32x256xbf16, #tpu.memory_space<vmem>>, vector<32x256xbf16>
      tpu.vector_store %arg10[%c0_28, %c0_29], %42 {strides = array<i32>} : memref<32x256xbf16, #tpu.memory_space<vmem>>, vector<32x256xbf16>,
      %44 = vector.extract_strided_slice %40 {offsets = [32, 0], sizes = [64, 256], strides = [1, 1]} : vector<96x256xf32> to vector<64x256xf32>
      %45 = arith.truncf %44 : vector<64x256xf32> to vector<64x256xbf16>
      %c0_30 = arith.constant 0 : index
      %c0_31 = arith.constant 0 : index
      %46 = vector.load %arg11[%c0_30, %c0_31] : memref<64x256xbf16, #tpu.memory_space<vmem>>, vector<64x256xbf16>
      tpu.vector_store %arg11[%c0_30, %c0_31], %45 {strides = array<i32>} : memref<64x256xbf16, #tpu.memory_space<vmem>>, vector<64x256xbf16>,
    } else {
    }
    %c0 = arith.constant 0 : index
    %c0_1 = arith.constant 0 : index
    %c0_2 = arith.constant 0 : index
    %3 = vector.load %arg2[%c0, %c0_1, %c0_2] : memref<1x64x128xf32, #tpu.memory_space<vmem>>, vector<1x64x128xf32>
    %4 = vector.shape_cast %3 : vector<1x64x128xf32> to vector<64x128xf32>
    %c0_3 = arith.constant 0 : index
    %c0_4 = arith.constant 0 : index
    %5 = vector.load %arg6[%c0_3, %c0_4] : memref<32x64xbf16, #tpu.memory_space<vmem>>, vector<32x64xbf16>
    %6 = arith.truncf %4 : vector<64x128xf32> to vector<64x128xbf16>
    %cst = arith.constant dense<0.000000e+00> : vector<32x128xf32>
    %7 = tpu.matmul %5, %6, %cst {dimension_numbers = #tpu.dot_dimension_numbers<[1], [0], [0], [1], [0, 0, 1, 1], [], []>} : vector<32x64xbf16>, vector<64x128xbf16>, vector<32x128xf32> -> vector<32x128xf32>
    %c0_5 = arith.constant 0 : index
    %c0_6 = arith.constant 0 : index
    %8 = vector.load %arg7[%c0_5, %c0_6] : memref<32x1xf32, #tpu.memory_space<vmem>>, vector<32x1xf32>
    %9 = vector.broadcast %8 : vector<32x1xf32> to vector<32x128xf32>
    %10 = arith.addf %7, %9 : vector<32x128xf32>
    %11 = arith.truncf %10 : vector<32x128xf32> to vector<32x128xbf16>
    %c0_7 = arith.constant 0 : index
    %c0_8 = arith.constant 0 : index
    %12 = vector.load %arg10[%c0_7, %c0_8] : memref<32x256xbf16, #tpu.memory_space<vmem>>, vector<32x256xbf16>
    %cst_9 = arith.constant dense<0.000000e+00> : vector<128x256xf32>
    %13 = tpu.matmul %11, %12, %cst_9 {dimension_numbers = #tpu.dot_dimension_numbers<[0], [0], [1], [1], [0, 1, 1, 1], [], []>} : vector<32x128xbf16>, vector<32x256xbf16>, vector<128x256xf32> -> vector<128x256xf32>
    %cst_10 = arith.constant dense<0xFF800000> : vector<128xf32>
    %14 = vector.multi_reduction <maximumf>, %13, %cst_10 [1] : vector<128x256xf32> to vector<128xf32>
    %15 = vector.shape_cast %14 : vector<128xf32> to vector<128x1xf32>
    %16 = vector.broadcast %15 : vector<128x1xf32> to vector<128x256xf32>
    %17 = arith.subf %13, %16 : vector<128x256xf32>
    %18 = math.exp %17 : vector<128x256xf32>
    %cst_11 = arith.constant dense<0.000000e+00> : vector<128xf32>
    %19 = vector.multi_reduction <add>, %18, %cst_11 [1] : vector<128x256xf32> to vector<128xf32>
    %20 = vector.shape_cast %19 : vector<128xf32> to vector<128x1xf32>
    %21 = tpu.reciprocal %20 {approx = true} : vector<128x1xf32> -> vector<128x1xf32>
    %22 = vector.broadcast %21 : vector<128x1xf32> to vector<128x256xf32>
    %23 = arith.mulf %18, %22 : vector<128x256xf32>
    %24 = arith.truncf %23 : vector<128x256xf32> to vector<128x256xbf16>
    %c0_12 = arith.constant 0 : index
    %c0_13 = arith.constant 0 : index
    %25 = vector.load %arg11[%c0_12, %c0_13] : memref<64x256xbf16, #tpu.memory_space<vmem>>, vector<64x256xbf16>
    %cst_14 = arith.constant dense<0.000000e+00> : vector<64x128xf32>
    %26 = tpu.matmul %25, %24, %cst_14 {dimension_numbers = #tpu.dot_dimension_numbers<[1], [1], [0], [0], [0, 0, 1, 0], [], []>} : vector<64x256xbf16>, vector<128x256xbf16>, vector<64x128xf32> -> vector<64x128xf32>
    %c0_15 = arith.constant 0 : index
    %c0_16 = arith.constant 0 : index
    %27 = vector.load %arg8[%c0_15, %c0_16] : memref<64x1xf32, #tpu.memory_space<vmem>>, vector<64x1xf32>
    %28 = vector.broadcast %27 : vector<64x1xf32> to vector<64x128xf32>
    %29 = arith.addf %26, %28 : vector<64x128xf32>
    %30 = arith.addf %4, %29 : vector<64x128xf32>
    %c0_17 = arith.constant 0 : index
    %c0_18 = arith.constant 0 : index
    %c0_19 = arith.constant 0 : index
    %31 = vector.load %arg9[%c0_17, %c0_18, %c0_19] : memref<1x64x128xf32, #tpu.memory_space<vmem>>, vector<1x64x128xf32>
    %32 = vector.shape_cast %31 : vector<1x64x128xf32> to vector<64x128xf32>
    %33 = vector.shape_cast %30 : vector<64x128xf32> to vector<1x64x128xf32>
    tpu.vector_store %arg9[%c0_17, %c0_18, %c0_19], %33 {strides = array<i32>} : memref<1x64x128xf32, #tpu.memory_space<vmem>>, vector<1x64x128xf32>,
    return
  }
  func.func @transform_0(%arg0: i32, %arg1: i32) -> (i32, i32, i32) {
    %c0_i32 = arith.constant 0 : i32
    %c0_i32_0 = arith.constant 0 : i32
    return %arg0, %c0_i32, %arg1 : i32, i32, i32
  }
  func.func @transform_1(%arg0: i32, %arg1: i32) -> (i32, i32, i32) {
    %c0_i32 = arith.constant 0 : i32
    %c0_i32_0 = arith.constant 0 : i32
    %c0_i32_1 = arith.constant 0 : i32
    return %arg0, %c0_i32, %c0_i32_0 : i32, i32, i32
  }
  func.func @transform_2(%arg0: i32, %arg1: i32) -> (i32, i32) {
    %c0_i32 = arith.constant 0 : i32
    %c0_i32_0 = arith.constant 0 : i32
    %c0_i32_1 = arith.constant 0 : i32
    return %c0_i32, %c0_i32_0 : i32, i32
  }
  func.func @transform_3(%arg0: i32, %arg1: i32) -> (i32, i32) {
    %c0_i32 = arith.constant 0 : i32
    %c0_i32_0 = arith.constant 0 : i32
    %c0_i32_1 = arith.constant 0 : i32
    return %c0_i32, %c0_i32_0 : i32, i32
  }
  func.func @transform_4(%arg0: i32, %arg1: i32) -> (i32, i32) {
    %c0_i32 = arith.constant 0 : i32
    %c0_i32_0 = arith.constant 0 : i32
    %c0_i32_1 = arith.constant 0 : i32
    return %c0_i32, %c0_i32_0 : i32, i32
  }
  func.func @transform_5(%arg0: i32, %arg1: i32) -> (i32, i32) {
    %c0_i32 = arith.constant 0 : i32
    %c0_i32_0 = arith.constant 0 : i32
    %c0_i32_1 = arith.constant 0 : i32
    return %c0_i32, %c0_i32_0 : i32, i32
  }
  func.func @transform_6(%arg0: i32, %arg1: i32) -> (i32, i32) {
    %c0_i32 = arith.constant 0 : i32
    %c0_i32_0 = arith.constant 0 : i32
    %c0_i32_1 = arith.constant 0 : i32
    return %c0_i32, %c0_i32_0 : i32, i32
  }
  func.func @transform_7(%arg0: i32, %arg1: i32) -> (i32, i32, i32) {
    %c0_i32 = arith.constant 0 : i32
    %c0_i32_0 = arith.constant 0 : i32
    return %arg0, %c0_i32, %arg1 : i32, i32, i32
  }
}

</mosaic_0001>

<llo_original>
// kernel: tpu_custom_call.1
$region0: #{tpu_custom_call.1}
  #allocation0 [shape = 'u32[]', space=smem, size = 0x4, offset = 0x4, fixed_abs, tag = 'smem constant byte address 0x4 - core index']
  #allocation1 [shape = 'u32[144,128]{1,0:T(1,128)}', space=vmem, size = 0x12000, scoped, tag = 'internal scratch']
  #allocation2 [shape = 'bf16[32,256]{1,0:T(8,128)(2,1)}', space=vmem, size = 0x4000, scoped, tag = 'scratch operand']
  #allocation3 [shape = 'bf16[64,256]{1,0:T(8,128)(2,1)}', space=vmem, size = 0x8000, scoped, tag = 'scratch operand']
  %s0 = inlined_call_operand.vmem [shape: f32[2,64,256], index: 0, kind: input, shape index: {}]
  %s1 = inlined_call_operand.hbm [shape: bf16[2,64,256], index: 1, kind: input, shape index: {}]
  %s2 = inlined_call_operand.vmem [shape: bf16[96,64], index: 2, kind: input, shape index: {}]
  %s3 = inlined_call_operand.vmem [shape: f32[96,1], index: 3, kind: input, shape index: {}]
  %s4 = inlined_call_operand.vmem [shape: bf16[32,64], index: 4, kind: input, shape index: {}]
  %s5 = inlined_call_operand.vmem [shape: f32[32,1], index: 5, kind: input, shape index: {}]
  %s6 = inlined_call_operand.vmem [shape: f32[64,1], index: 6, kind: input, shape index: {}]
  %s7 = inlined_call_operand.hbm [shape: f32[2,64,256], index: 7, kind: output, shape index: {}]
  %s8 = sld [smem:[#allocation0]]
  $region107: #{tpu_custom_call.1} parent=0
    _
  %s10 = ssub.s32 1, %s8
  %s11 = scalar_select 0, %s10, %s8
  $region1: #{tpu_custom_call.1} parent=0
    #allocation4 [shape = 'u8[65536]{0}', space=vmem, size = 0x10000, scoped, tag = 'input window, operand 0']
    #allocation5 [shape = 'u8[32768]{0}', space=vmem, size = 0x8000, scoped, tag = 'input window, operand 1, single buffered']
    #allocation6 [shape = 's32[2]{0}', space=sflag, size = 0x8, scoped, tag = 'scoped memory for tpu_custom_call.1']
    #allocation7 [shape = 's32[2]{0}', space=sflag, size = 0x8, scoped, tag = 'scoped memory for tpu_custom_call.1']
    #allocation8 [shape = 'u8[65536]{0}', space=vmem, size = 0x10000, scoped, tag = 'output window, operand 0']
    %12 = vsyncpa [#allocation6], 0
    %13 = vsyncpa [#allocation7], 0
    %s14 = scalar_lea.sflag [#allocation7], 1
    %15 = vsyncpa %s14, 0
    loop: start=0, step=1, limit=6
    $region2: #{tpu_custom_call.1} parent=1 // loop_pre_header
      _
    $region3: #{tpu_custom_call.1} parent=1 // loop_header
      %s17 = sphi 0, %s21
      %p18 = scmp.ge.s32.totalorder %s17, 6
      %s24 = sphi 0, %s36
      %s25 = sphi 0, %s32
      %s26 = sphi 0, %s24
      %s27 = sphi 0, %s25
      %s28 = sphi 0, %s26
      %s29 = sphi 0, %s27
      %s41 = sphi 0, %s43
      %s44 = sphi 0, %s41
      %s45 = sphi 0, %s44
      %s61 = sphi 0, %s45
      %s67 = sphi 0, %s69
      %s70 = sphi 0, %s67
      %s71 = sphi 0, %s70
      %s87 = sphi 0, %s71
      %s91 = sphi 0, %s91
      %s93 = sphi 0, %s91
      %s94 = sphi 0, %s93
      %s108 = sphi 0, %s94
      %s112 = sphi 0, %s112
      %s114 = sphi 0, %s112
      %s115 = sphi 0, %s114
      %s129 = sphi 0, %s115
      %s133 = sphi 0, %s133
      %s135 = sphi 0, %s133
      %s136 = sphi 0, %s135
      %s150 = sphi 0, %s136
      %s154 = sphi 0, %s154
      %s156 = sphi 0, %s154
      %s157 = sphi 0, %s156
      %s171 = sphi 0, %s157
      %s175 = sphi 0, %s175
      %s177 = sphi 0, %s175
      %s178 = sphi 0, %s177
      %s192 = sphi 0, %s178
      %s200 = sphi 0, %s202
      %s203 = sphi 0, %s200
      %s204 = sphi 0, %s203
      %s220 = sphi 0, %s204
    $region4: #{tpu_custom_call.1} parent=1 // loop_header_branch
      %20 = sbr.rel (%p18) target = $region8
    $region5: #{tpu_custom_call.1} parent=1 // loop_body
      %s22 = ssub.s32 %s17, 1
      %s23 = ssub.s32 %s17, 2
      %s30 = sadd.s32 1, %s25
      %p31 = scmp.ge.s32.totalorder %s30, 2
      %s32 = scalar_select %p31, 0, %s30
      %s33 = sadd.s32 1, %s24
      %s34 = scalar_select %p31, %s33, %s24
      %p35 = scmp.ge.s32.totalorder %s34, 2
      %s36 = scalar_select %p35, 0, %s34
      %s37 = ssub.s32 %s24, %s36
      %s38 = ssub.s32 %s25, %s32
      %s39 = sor.u32 %s37, %s38
      %p40 = scmp.eq.s32.totalorder %s39, 0
      %s42 = sadd.s32 %s41, 1
      %s43 = scalar_select %p40, %s41, %s42
      %p46 = pneg %p40
      %p47 = scmp.eq.s32.totalorder %s17, 3
      %p48 = por %p46, %p47
      %p49 = scmp.ne.s32.totalorder %s41, %s44
      %p50 = scmp.eq.s32.totalorder %s17, 0
      %p51 = por %p49, %p50
      %p52 = scmp.ne.s32.totalorder %s41, %s44
      %p53 = scmp.eq.s32.totalorder %s22, 3
      %p54 = por %p52, %p53
      %p55 = scmp.ne.s32.totalorder %s44, %s45
      %p56 = scmp.eq.s32.totalorder %s22, 0
      %p57 = por %p55, %p56
      %p58 = scmp.ne.s32.totalorder %s44, %s45
      %p59 = scmp.eq.s32.totalorder %s23, 3
      %p60 = por %p58, %p59
      %p62 = scmp.ne.s32.totalorder %s45, %s61
      %p63 = scmp.eq.s32.totalorder %s23, 0
      %p64 = por %p62, %p63
      %s65 = ssub.s32 %s24, %s36
      %p66 = scmp.eq.s32.totalorder %s65, 0
      %s68 = sadd.s32 %s67, 1
      %s69 = scalar_select %p66, %s67, %s68
      %p72 = pneg %p66
      %p73 = scmp.eq.s32.totalorder %s17, 3
      %p74 = por %p72, %p73
      %p75 = scmp.ne.s32.totalorder %s67, %s70
      %p76 = scmp.eq.s32.totalorder %s17, 0
      %p77 = por %p75, %p76
      %p78 = scmp.ne.s32.totalorder %s67, %s70
      %p79 = scmp.eq.s32.totalorder %s22, 3
      %p80 = por %p78, %p79
      %p81 = scmp.ne.s32.totalorder %s70, %s71
      %p82 = scmp.eq.s32.totalorder %s22, 0
      %p83 = por %p81, %p82
      %p84 = scmp.ne.s32.totalorder %s70, %s71
      %p85 = scmp.eq.s32.totalorder %s23, 3
      %p86 = por %p84, %p85
      %p88 = scmp.ne.s32.totalorder %s71, %s87
      %p89 = scmp.eq.s32.totalorder %s23, 0
      %p90 = por %p88, %p89
      %s92 = sadd.s32 %s91, 1
      %p95 = scmp.eq.s32.totalorder %s17, 3
      %p96 = scmp.ne.s32.totalorder %s91, %s93
      %p97 = scmp.eq.s32.totalorder %s17, 0
      %p98 = por %p96, %p97
      %p99 = scmp.ne.s32.totalorder %s91, %s93
      %p100 = scmp.eq.s32.totalorder %s22, 3
      %p101 = por %p99, %p100
      %p102 = scmp.ne.s32.totalorder %s93, %s94
      %p103 = scmp.eq.s32.totalorder %s22, 0
      %p104 = por %p102, %p103
      %p105 = scmp.ne.s32.totalorder %s93, %s94
      %p106 = scmp.eq.s32.totalorder %s23, 3
      %p107 = por %p105, %p106
      %p109 = scmp.ne.s32.totalorder %s94, %s108
      %p110 = scmp.eq.s32.totalorder %s23, 0
      %p111 = por %p109, %p110
      %s113 = sadd.s32 %s112, 1
      %p116 = scmp.eq.s32.totalorder %s17, 3
      %p117 = scmp.ne.s32.totalorder %s112, %s114
      %p118 = scmp.eq.s32.totalorder %s17, 0
      %p119 = por %p117, %p118
      %p120 = scmp.ne.s32.totalorder %s112, %s114
      %p121 = scmp.eq.s32.totalorder %s22, 3
      %p122 = por %p120, %p121
      %p123 = scmp.ne.s32.totalorder %s114, %s115
      %p124 = scmp.eq.s32.totalorder %s22, 0
      %p125 = por %p123, %p124
      %p126 = scmp.ne.s32.totalorder %s114, %s115
      %p127 = scmp.eq.s32.totalorder %s23, 3
      %p128 = por %p126, %p127
      %p130 = scmp.ne.s32.totalorder %s115, %s129
      %p131 = scmp.eq.s32.totalorder %s23, 0
      %p132 = por %p130, %p131
      %s134 = sadd.s32 %s133, 1
      %p137 = scmp.eq.s32.totalorder %s17, 3
      %p138 = scmp.ne.s32.totalorder %s133, %s135
      %p139 = scmp.eq.s32.totalorder %s17, 0
      %p140 = por %p138, %p139
      %p141 = scmp.ne.s32.totalorder %s133, %s135
      %p142 = scmp.eq.s32.totalorder %s22, 3
      %p143 = por %p141, %p142
      %p144 = scmp.ne.s32.totalorder %s135, %s136
      %p145 = scmp.eq.s32.totalorder %s22, 0
      %p146 = por %p144, %p145
      %p147 = scmp.ne.s32.totalorder %s135, %s136
      %p148 = scmp.eq.s32.totalorder %s23, 3
      %p149 = por %p147, %p148
      %p151 = scmp.ne.s32.totalorder %s136, %s150
      %p152 = scmp.eq.s32.totalorder %s23, 0
      %p153 = por %p151, %p152
      %s155 = sadd.s32 %s154, 1
      %p158 = scmp.eq.s32.totalorder %s17, 3
      %p159 = scmp.ne.s32.totalorder %s154, %s156
      %p160 = scmp.eq.s32.totalorder %s17, 0
      %p161 = por %p159, %p160
      %p162 = scmp.ne.s32.totalorder %s154, %s156
      %p163 = scmp.eq.s32.totalorder %s22, 3
      %p164 = por %p162, %p163
      %p165 = scmp.ne.s32.totalorder %s156, %s157
      %p166 = scmp.eq.s32.totalorder %s22, 0
      %p167 = por %p165, %p166
      %p168 = scmp.ne.s32.totalorder %s156, %s157
      %p169 = scmp.eq.s32.totalorder %s23, 3
      %p170 = por %p168, %p169
      %p172 = scmp.ne.s32.totalorder %s157, %s171
      %p173 = scmp.eq.s32.totalorder %s23, 0
      %p174 = por %p172, %p173
      %s176 = sadd.s32 %s175, 1
      %p179 = scmp.eq.s32.totalorder %s17, 3
      %p180 = scmp.ne.s32.totalorder %s175, %s177
      %p181 = scmp.eq.s32.totalorder %s17, 0
      %p182 = por %p180, %p181
      %p183 = scmp.ne.s32.totalorder %s175, %s177
      %p184 = scmp.eq.s32.totalorder %s22, 3
      %p185 = por %p183, %p184
      %p186 = scmp.ne.s32.totalorder %s177, %s178
      %p187 = scmp.eq.s32.totalorder %s22, 0
      %p188 = por %p186, %p187
      %p189 = scmp.ne.s32.totalorder %s177, %s178
      %p190 = scmp.eq.s32.totalorder %s23, 3
      %p191 = por %p189, %p190
      %p193 = scmp.ne.s32.totalorder %s178, %s192
      %p194 = scmp.eq.s32.totalorder %s23, 0
      %p195 = por %p193, %p194
      %s196 = ssub.s32 %s24, %s36
      %s197 = ssub.s32 %s25, %s32
      %s198 = sor.u32 %s196, %s197
      %p199 = scmp.eq.s32.totalorder %s198, 0
      %s201 = sadd.s32 %s200, 1
      %s202 = scalar_select %p199, %s200, %s201
      %p205 = pneg %p199
      %p206 = scmp.eq.s32.totalorder %s17, 3
      %p207 = por %p205, %p206
      %p208 = scmp.ne.s32.totalorder %s200, %s203
      %p209 = scmp.eq.s32.totalorder %s17, 0
      %p210 = por %p208, %p209
      %p211 = scmp.ne.s32.totalorder %s200, %s203
      %p212 = scmp.eq.s32.totalorder %s22, 3
      %p213 = por %p211, %p212
      %p214 = scmp.ne.s32.totalorder %s203, %s204
      %p215 = scmp.eq.s32.totalorder %s22, 0
      %p216 = por %p214, %p215
      %p217 = scmp.ne.s32.totalorder %s203, %s204
      %p218 = scmp.eq.s32.totalorder %s23, 3
      %p219 = por %p217, %p218
      %p221 = scmp.ne.s32.totalorder %s204, %s220
      %p222 = scmp.eq.s32.totalorder %s23, 0
      %p223 = por %p221, %p222
      %p224 = scmp.le.s32.totalorder 1, %s17
      %p225 = scmp.lt.s32.totalorder %s17, 5
      %p226 = pnand %p224, %p225
      %p227 = pneg %p226
      // Predicated region
      $region9: #{tpu_custom_call.1} parent=5 // pred_check
        _
      $region10: #{tpu_custom_call.1} parent=5 // pred_check_branch
        %229 = sbr.rel (%p226) target = $region12
      $region11: #{tpu_custom_call.1} parent=5 // pred_region
        %s230 = ssub.s32 %s17, 1
        // Predicated region
        $region13: #{tpu_custom_call.1} parent=11 // pred_check
          %p231 = pneg %p83
        $region14: #{tpu_custom_call.1} parent=11 // pred_check_branch
          %233 = sbr.rel (%p231) target = $region16
        $region15: #{tpu_custom_call.1} parent=11 // pred_region
          %s235 = ssub.s32 1024, 1024
          %236 = vsyncadd [#allocation6], %s235
          %s237 = smul.addr %s26, 16
          %s238 = smul.addr %s237, 64
          %s239 = scalar_lea.hbm %s1, %s238
          %s240 = sshll.u32 [#allocation5], 4
          %s241 = int_to_ptr.vmem [resolvable:$true] %s240
          %246 = dma.hbm_to_vmem [thread:$0]  %s239, 1024, %s241, [#allocation6], 128, 128, 8
        $region16: #{tpu_custom_call.1} parent=11 // pred_fallthru
          _
        // Predicated region
        $region17: #{tpu_custom_call.1} parent=11 // pred_check
          %p247 = pneg %p104
        $region18: #{tpu_custom_call.1} parent=11 // pred_check_branch
          %249 = sbr.rel (%p247) target = $region20
        $region19: #{tpu_custom_call.1} parent=11 // pred_region
          _
        $region20: #{tpu_custom_call.1} parent=11 // pred_fallthru
          _
        // Predicated region
        $region21: #{tpu_custom_call.1} parent=11 // pred_check
          %p250 = pneg %p125
        $region22: #{tpu_custom_call.1} parent=11 // pred_check_branch
          %252 = sbr.rel (%p250) target = $region24
        $region23: #{tpu_custom_call.1} parent=11 // pred_region
          _
        $region24: #{tpu_custom_call.1} parent=11 // pred_fallthru
          _
        // Predicated region
        $region25: #{tpu_custom_call.1} parent=11 // pred_check
          %p253 = pneg %p146
        $region26: #{tpu_custom_call.1} parent=11 // pred_check_branch
          %255 = sbr.rel (%p253) target = $region28
        $region27: #{tpu_custom_call.1} parent=11 // pred_region
          _
        $region28: #{tpu_custom_call.1} parent=11 // pred_fallthru
          _
        // Predicated region
        $region29: #{tpu_custom_call.1} parent=11 // pred_check
          %p256 = pneg %p167
        $region30: #{tpu_custom_call.1} parent=11 // pred_check_branch
          %258 = sbr.rel (%p256) target = $region32
        $region31: #{tpu_custom_call.1} parent=11 // pred_region
          _
        $region32: #{tpu_custom_call.1} parent=11 // pred_fallthru
          _
        // Predicated region
        $region33: #{tpu_custom_call.1} parent=11 // pred_check
          %p259 = pneg %p188
        $region34: #{tpu_custom_call.1} parent=11 // pred_check_branch
          %261 = sbr.rel (%p259) target = $region36
        $region35: #{tpu_custom_call.1} parent=11 // pred_region
          _
        $region36: #{tpu_custom_call.1} parent=11 // pred_fallthru
          _
      $region12: #{tpu_custom_call.1} parent=5 // pred_fallthru
        _
      %p262 = scmp.lt.s32.totalorder %s17, 4
      // Predicated region
      $region37: #{tpu_custom_call.1} parent=5 // pred_check
        %p263 = pneg %p262
      $region38: #{tpu_custom_call.1} parent=5 // pred_check_branch
        %265 = sbr.rel (%p263) target = $region40
      $region39: #{tpu_custom_call.1} parent=5 // pred_region
        // Predicated region
        $region41: #{tpu_custom_call.1} parent=39 // pred_check
          %p266 = pneg %p51
        $region42: #{tpu_custom_call.1} parent=39 // pred_check_branch
          %268 = sbr.rel (%p266) target = $region44
        $region43: #{tpu_custom_call.1} parent=39 // pred_region
          %s269 = sand.u32 %s41, 1
          %s270 = sand.u32 %s41, 1
          %s271 = smul.addr %s270, 64
          %s272 = scalar_lea.vmem [#allocation4], %s271
          %s273 = smul.addr %s24, 16
          %s274 = sadd.s32 %s25, %s273
          %s275 = smul.addr %s274, 8
          %s276 = scalar_lea.vmem %s0, %s275
          // Predicated region
          $region45: #{tpu_custom_call.1} parent=43 // pred_check
            _
          $region46: #{tpu_custom_call.1} parent=43 // pred_check_branch
            %278 = sbr.rel (0) target = $region48
          $region47: #{tpu_custom_call.1} parent=43 // pred_region
            // Predicated region
            $region49: #{tpu_custom_call.1} parent=47 // pred_check
              _
            $region50: #{tpu_custom_call.1} parent=47 // pred_check_branch
              %280 = sbr.rel (0) target = $region52
            $region51: #{tpu_custom_call.1} parent=47 // pred_region
              // Predicated region
              $region64: #{tpu_custom_call.1} parent=51 // pred_check
                _
              $region65: #{tpu_custom_call.1} parent=51 // pred_check_branch
                %310 = sbr.rel (0) target = $region67
              $region66: #{tpu_custom_call.1} parent=51 // pred_region
                loop: start=0, step=1, limit=1
                $region68: #{tpu_custom_call.1} parent=66 // loop_pre_header
                  _
                $region69: #{tpu_custom_call.1} parent=66 // loop_header
                  %s312 = sphi 0, %s316
                  %p313 = scmp.ge.s32.totalorder %s312, 1
                  %s317 = sphi %s276, %s276
                  %s318 = sphi %s272, %s272
                $region70: #{tpu_custom_call.1} parent=66 // loop_header_branch
                  %315 = sbr.rel (%p313) target = $region74
                $region71: #{tpu_custom_call.1} parent=66 // loop_body
                  %v319 = vld [vmem:[%s317] sm:$0xff]
                  %320 = vst [vmem:[%s318] sm:$0xff] %v319
                  %v321 = vld [vmem:[%s317 + $0x10] sm:$0xff]
                  %322 = vst [vmem:[%s318 + $0x8] sm:$0xff] %v321
                  %v323 = vld [vmem:[%s317 + $0x20] sm:$0xff]
                  %324 = vst [vmem:[%s318 + $0x10] sm:$0xff] %v323
                  %v325 = vld [vmem:[%s317 + $0x30] sm:$0xff]
                  %326 = vst [vmem:[%s318 + $0x18] sm:$0xff] %v325
                  %v327 = vld [vmem:[%s317 + $0x40] sm:$0xff]
                  %328 = vst [vmem:[%s318 + $0x20] sm:$0xff] %v327
                  %v329 = vld [vmem:[%s317 + $0x50] sm:$0xff]
                  %330 = vst [vmem:[%s318 + $0x28] sm:$0xff] %v329
                  %v331 = vld [vmem:[%s317 + $0x60] sm:$0xff]
                  %332 = vst [vmem:[%s318 + $0x30] sm:$0xff] %v331
                  %v333 = vld [vmem:[%s317 + $0x70] sm:$0xff]
                  %334 = vst [vmem:[%s318 + $0x38] sm:$0xff] %v333
                $region72: #{tpu_custom_call.1} parent=66 // loop_footer
                  %s316 = sadd.s32 1, %s312
                $region73: #{tpu_custom_call.1} parent=66 // loop_footer_branch
                  %311 = sbr.rel target = $region69
                $region74: #{tpu_custom_call.1} parent=66 // loop_exit
                  _
              $region67: #{tpu_custom_call.1} parent=51 // pred_fallthru
                _
              // Predicated region
              $region75: #{tpu_custom_call.1} parent=51 // pred_check
                _
              $region76: #{tpu_custom_call.1} parent=51 // pred_check_branch
                %336 = sbr.rel target = $region78
              $region77: #{tpu_custom_call.1} parent=51 // pred_region
                _
              $region78: #{tpu_custom_call.1} parent=51 // pred_fallthru
                _
            $region52: #{tpu_custom_call.1} parent=47 // pred_fallthru
              _
            // Predicated region
            $region53: #{tpu_custom_call.1} parent=47 // pred_check
              _
            $region54: #{tpu_custom_call.1} parent=47 // pred_check_branch
              %282 = sbr.rel target = $region56
            $region55: #{tpu_custom_call.1} parent=47 // pred_region
              %s284 = ssub.s32 256, 1
              loop: start=0, step=1, limit=1
              $region57: #{tpu_custom_call.1} parent=55 // loop_pre_header
                _
              $region58: #{tpu_custom_call.1} parent=55 // loop_header
                %s286 = sphi 0, %s290
                %p287 = scmp.ge.s32.totalorder %s286, 1
                %s291 = sphi %s276, %s276
                %s292 = sphi %s272, %s272
              $region59: #{tpu_custom_call.1} parent=55 // loop_header_branch
                %289 = sbr.rel (%p287) target = $region63
              $region60: #{tpu_custom_call.1} parent=55 // loop_body
                %v293 = vld [vmem:[%s291] sm:%s284]
                %294 = vst [vmem:[%s292] sm:%s284] %v293
                %v295 = vld [vmem:[%s291 + $0x10] sm:%s284]
                %296 = vst [vmem:[%s292 + $0x8] sm:%s284] %v295
                %v297 = vld [vmem:[%s291 + $0x20] sm:%s284]
                %298 = vst [vmem:[%s292 + $0x10] sm:%s284] %v297
                %v299 = vld [vmem:[%s291 + $0x30] sm:%s284]
                %300 = vst [vmem:[%s292 + $0x18] sm:%s284] %v299
                %v301 = vld [vmem:[%s291 + $0x40] sm:%s284]
                %302 = vst [vmem:[%s292 + $0x20] sm:%s284] %v301
                %v303 = vld [vmem:[%s291 + $0x50] sm:%s284]
                %304 = vst [vmem:[%s292 + $0x28] sm:%s284] %v303
                %v305 = vld [vmem:[%s291 + $0x60] sm:%s284]
                %306 = vst [vmem:[%s292 + $0x30] sm:%s284] %v305
                %v307 = vld [vmem:[%s291 + $0x70] sm:%s284]
                %308 = vst [vmem:[%s292 + $0x38] sm:%s284] %v307
              $region61: #{tpu_custom_call.1} parent=55 // loop_footer
                %s290 = sadd.s32 1, %s286
              $region62: #{tpu_custom_call.1} parent=55 // loop_footer_branch
                %285 = sbr.rel target = $region58
              $region63: #{tpu_custom_call.1} parent=55 // loop_exit
                _
            $region56: #{tpu_custom_call.1} parent=47 // pred_fallthru
              _
          $region48: #{tpu_custom_call.1} parent=43 // pred_fallthru
            _
          %337 = vnop
        $region44: #{tpu_custom_call.1} parent=39 // pred_fallthru
          _
      $region40: #{tpu_custom_call.1} parent=5 // pred_fallthru
        _
      %p338 = scmp.le.s32.totalorder 1, %s17
      %p339 = scmp.lt.s32.totalorder %s17, 5
      %p340 = pnand %p338, %p339
      %p341 = pneg %p340
      // Predicated region
      $region79: #{tpu_custom_call.1} parent=5 // pred_check
        _
      $region80: #{tpu_custom_call.1} parent=5 // pred_check_branch
        %343 = sbr.rel (%p340) target = $region82
      $region81: #{tpu_custom_call.1} parent=5 // pred_region
        %s344 = ssub.s32 %s17, 1
        %s345 = sand.u32 %s44, 1
        %s346 = sand.u32 %s44, 1
        %s347 = smul.addr %s346, 64
        %s348 = scalar_lea.vmem [#allocation4], %s347
        // Predicated region
        $region83: #{tpu_custom_call.1} parent=81 // pred_check
          %p349 = pneg %p57
        $region84: #{tpu_custom_call.1} parent=81 // pred_check_branch
          %351 = sbr.rel (%p349) target = $region86
        $region85: #{tpu_custom_call.1} parent=81 // pred_region
          _
        $region86: #{tpu_custom_call.1} parent=81 // pred_fallthru
          _
        // Predicated region
        $region87: #{tpu_custom_call.1} parent=81 // pred_check
          %p352 = pneg %p83
        $region88: #{tpu_custom_call.1} parent=81 // pred_check_branch
          %354 = sbr.rel (%p352) target = $region90
        $region89: #{tpu_custom_call.1} parent=81 // pred_region
          %355 = dma.done [#allocation6], 1024
        $region90: #{tpu_custom_call.1} parent=81 // pred_fallthru
          _
        %s356 = sand.u32 %s44, 1
        %s357 = sand.u32 %s44, 1
        %s358 = smul.addr %s357, 64
        %s359 = scalar_lea.vmem [#allocation4], %s358
        %p360 = pneg %p57
        %p361 = pneg %p54
        %p362 = pneg %p83
        %p363 = pneg %p80
        %p364 = pneg %p104
        %p365 = pneg %p101
        %p366 = pneg %p125
        %p367 = pneg %p122
        %p368 = pneg %p146
        %p369 = pneg %p143
        %p370 = pneg %p167
        %p371 = pneg %p164
        %p372 = pneg %p188
        %p373 = pneg %p185
        %p374 = pneg %p216
        %p375 = pneg %p213
        %s376 = sand.u32 %s203, 1
        %s377 = scalar_lea.sflag [#allocation7], %s376
        %s378 = sand.u32 %s203, 1
        %s379 = smul.addr %s378, 64
        %s380 = scalar_lea.vmem [#allocation8], %s379
        %p382 = scmp.eq.s32.totalorder %s27, 0
        // Predicated region
        $region91: #{tpu_custom_call.1} parent=81 // pred_check
          %p383 = pneg %p382
        $region92: #{tpu_custom_call.1} parent=81 // pred_check_branch
          %385 = sbr.rel (%p383) target = $region94
        $region93: #{tpu_custom_call.1} parent=81 // pred_region
          %v386 = vld [vmem:[#allocation5] sm:$0xff]
          %v387 = vld [vmem:[#allocation5 + $0x8] sm:$0xff]
          %v388 = vld [vmem:[#allocation5 + $0x10] sm:$0xff]
          %v389 = vld [vmem:[#allocation5 + $0x18] sm:$0xff]
          %v390 = vld [vmem:[#allocation5 + $0x20] sm:$0xff]
          %v391 = vld [vmem:[#allocation5 + $0x28] sm:$0xff]
          %v392 = vld [vmem:[#allocation5 + $0x30] sm:$0xff]
          %v393 = vld [vmem:[#allocation5 + $0x38] sm:$0xff]
          %v394 = vld [vmem:[%s2] sm:$0xf]
          %v395 = vld [vmem:[%s2 + $0x4] sm:$0xf]
          %v396 = vld [vmem:[%s2 + $0x8] sm:$0xf]
          %v397 = vld [vmem:[%s2 + $0xc] sm:$0xf]
          %v398 = vld [vmem:[%s2 + $0x10] sm:$0xf]
          %v399 = vld [vmem:[%s2 + $0x14] sm:$0xf]
          %v400 = vld [vmem:[%s2 + $0x18] sm:$0xf]
          %v401 = vld [vmem:[%s2 + $0x1c] sm:$0xf]
          %v402 = vld [vmem:[%s2 + $0x20] sm:$0xf]
          %v403 = vld [vmem:[%s2 + $0x24] sm:$0xf]
          %v404 = vld [vmem:[%s2 + $0x28] sm:$0xf]
          %v405 = vld [vmem:[%s2 + $0x2c] sm:$0xf]
          %v406 = vld [vmem:[%s3] sm:$0xff]
          %v407 = vld [vmem:[%s3 + $0x8] sm:$0xff]
          %v408 = vld [vmem:[%s3 + $0x10] sm:$0xff]
          %v409 = vld [vmem:[%s3 + $0x18] sm:$0xff]
          %v410 = vld [vmem:[%s3 + $0x20] sm:$0xff]
          %v411 = vld [vmem:[%s3 + $0x28] sm:$0xff]
          %v412 = vld [vmem:[%s3 + $0x30] sm:$0xff]
          %v413 = vld [vmem:[%s3 + $0x38] sm:$0xff]
          %v414 = vld [vmem:[%s3 + $0x40] sm:$0xff]
          %v415 = vld [vmem:[%s3 + $0x48] sm:$0xff]
          %v416 = vld [vmem:[%s3 + $0x50] sm:$0xff]
          %v417 = vld [vmem:[%s3 + $0x58] sm:$0xff]
          %419 = vset.pattern.permute.xlu0 0
          %420 = vperm.xlu0 %419, %v406
          %v421 = vpop.permute.xlu0 %420
          %424 = vset.pattern.permute.xlu0 0
          %425 = vperm.xlu0 %424, %v407
          %v426 = vpop.permute.xlu0 %425
          %429 = vset.pattern.permute.xlu0 0
          %430 = vperm.xlu0 %429, %v408
          %v431 = vpop.permute.xlu0 %430
          %434 = vset.pattern.permute.xlu0 0
          %435 = vperm.xlu0 %434, %v409
          %v436 = vpop.permute.xlu0 %435
          %439 = vset.pattern.permute.xlu0 0
          %440 = vperm.xlu0 %439, %v410
          %v441 = vpop.permute.xlu0 %440
          %444 = vset.pattern.permute.xlu0 0
          %445 = vperm.xlu0 %444, %v411
          %v446 = vpop.permute.xlu0 %445
          %449 = vset.pattern.permute.xlu0 0
          %450 = vperm.xlu0 %449, %v412
          %v451 = vpop.permute.xlu0 %450
          %454 = vset.pattern.permute.xlu0 0
          %455 = vperm.xlu0 %454, %v413
          %v456 = vpop.permute.xlu0 %455
          %459 = vset.pattern.permute.xlu0 0
          %460 = vperm.xlu0 %459, %v414
          %v461 = vpop.permute.xlu0 %460
          %464 = vset.pattern.permute.xlu0 0
          %465 = vperm.xlu0 %464, %v415
          %v466 = vpop.permute.xlu0 %465
          %469 = vset.pattern.permute.xlu0 0
          %470 = vperm.xlu0 %469, %v416
          %v471 = vpop.permute.xlu0 %470
          %474 = vset.pattern.permute.xlu0 0
          %475 = vperm.xlu0 %474, %v417
          %v476 = vpop.permute.xlu0 %475
          %v490 = vunpack.c.l.b16 %v394
          %v491 = vunpack.c.l.b16 %v395
          %v492 = vunpack.c.l.b16 %v396
          %v493 = vunpack.c.l.b16 %v397
          %v494 = vunpack.c.l.b16 %v398
          %v495 = vunpack.c.l.b16 %v399
          %v496 = vunpack.c.l.b16 %v400
          %v497 = vunpack.c.l.b16 %v401
          %v498 = vunpack.c.l.b16 %v402
          %v499 = vunpack.c.l.b16 %v403
          %v500 = vunpack.c.l.b16 %v404
          %v501 = vunpack.c.l.b16 %v405
          %v502 = vpack.c.b16 %v491, %v490
          %v503 = vpack.c.b16 %v493, %v492
          %v504 = vpack.c.b16 %v495, %v494
          %v505 = vpack.c.b16 %v497, %v496
          %v506 = vpack.c.b16 %v499, %v498
          %v507 = vpack.c.b16 %v501, %v500
          %v516 = vunpack.c.l.b16 %v386
          %v517 = vunpack.c.h.b16 %v386
          %v518 = vunpack.c.l.b16 %v387
          %v519 = vunpack.c.h.b16 %v387
          %v520 = vunpack.c.l.b16 %v388
          %v521 = vunpack.c.h.b16 %v388
          %v522 = vunpack.c.l.b16 %v389
          %v523 = vunpack.c.h.b16 %v389
          %v524 = vunpack.c.l.b16 %v390
          %v525 = vunpack.c.h.b16 %v390
          %v526 = vunpack.c.l.b16 %v391
          %v527 = vunpack.c.h.b16 %v391
          %v528 = vunpack.c.l.b16 %v392
          %v529 = vunpack.c.h.b16 %v392
          %v530 = vunpack.c.l.b16 %v393
          %v531 = vunpack.c.h.b16 %v393
          %v532 = vpack.c.b16 %v518, %v516
          %v533 = vpack.c.b16 %v519, %v517
          %v534 = vpack.c.b16 %v522, %v520
          %v535 = vpack.c.b16 %v523, %v521
          %v536 = vpack.c.b16 %v526, %v524
          %v537 = vpack.c.b16 %v527, %v525
          %v538 = vpack.c.b16 %v530, %v528
          %v539 = vpack.c.b16 %v531, %v529
          %vm548 = vcmask 523264
          %v550 = vsel %vm548, %v502, 0
          %v553 = vsel %vm548, %v503, 0
          %v556 = vsel %vm548, %v504, 0
          %v559 = vsel %vm548, %v505, 0
          %v562 = vsel %vm548, %v506, 0
          %v565 = vsel %vm548, %v507, 0
          %567 = vmatprep.subr.bf16.mxu0 0
          %568 = vmatpush1.bf16.msra.mxu0 0
          %569 = vmatprep.subr.bf16.mxu0 0
          %570 = vmatpush1.bf16.msra.mxu0 0
          %571 = vmatprep.subr.bf16.mxu0 0
          %572 = vmatpush1.bf16.msra.mxu0 0
          %573 = vmatprep.subr.bf16.mxu0 0
          %574 = vmatpush1.bf16.msra.mxu0 0
          %575 = vmatprep.subr.bf16.mxu0 %v539
          %576 = vmatpush1.bf16.msra.mxu0 %v538
          %577 = vmatprep.subr.bf16.mxu0 %v537
          %578 = vmatpush1.bf16.msra.mxu0 %v536
          %579 = vmatprep.subr.bf16.mxu0 %v535
          %580 = vmatpush1.bf16.msra.mxu0 %v534
          %581 = vmatprep.subr.bf16.mxu0 %v533
          %582 = vmatpush1.bf16.msra.mxu0 %v532
          %583 = vmatprep.subr.bf16.mxu0 0
          %584 = vmatpush2.bf16.msra.mxu0 0
          %585 = vmatprep.subr.bf16.mxu0 0
          %586 = vmatpush2.bf16.msra.mxu0 0
          %587 = vmatprep.subr.bf16.mxu0 0
          %588 = vmatpush2.bf16.msra.mxu0 0
          %589 = vmatprep.subr.bf16.mxu0 0
          %590 = vmatpush2.bf16.msra.mxu0 0
          %591 = vmatprep.subr.bf16.mxu0 0
          %592 = vmatpush2.bf16.msra.mxu0 0
          %593 = vmatprep.subr.bf16.mxu0 0
          %594 = vmatpush2.bf16.msra.mxu0 0
          %595 = vmatprep.subr.bf16.mxu0 0
          %596 = vmatpush2.bf16.msra.mxu0 0
          %597 = vmatprep.subr.bf16.mxu0 0
          %598 = vmatpush2.bf16.msra.mxu0 0
          %599 = vmatprep.mubr.bf16.mxu0 0
          %600 = vmatmul.mubr.bf16.gmra.mxu0 %v550
          %v601 = vpop.f32.mrf.mxu0
          %v602 = vadd.f32 %v421, %v601
          %v603 = vpop.f32.mrf.mxu0
          %v604 = vadd.f32 %v421, %v603
          %v605 = vpop.f32.mrf.mxu0
          %v606 = vadd.f32 %v426, %v605
          %v607 = vpop.f32.mrf.mxu0
          %v608 = vadd.f32 %v426, %v607
          %609 = vmatprep.mubr.bf16.mxu0 0
          %610 = vmatmul.mubr.bf16.gmra.mxu0 %v553
          %v611 = vpop.f32.mrf.mxu0
          %v612 = vadd.f32 %v431, %v611
          %v613 = vpop.f32.mrf.mxu0
          %v614 = vadd.f32 %v431, %v613
          %v615 = vpop.f32.mrf.mxu0
          %v616 = vadd.f32 %v436, %v615
          %v617 = vpop.f32.mrf.mxu0
          %v618 = vadd.f32 %v436, %v617
          %619 = vmatprep.mubr.bf16.mxu0 0
          %620 = vmatmul.mubr.bf16.gmra.mxu0 %v556
          %v621 = vpop.f32.mrf.mxu0
          %v622 = vadd.f32 %v441, %v621
          %v623 = vpop.f32.mrf.mxu0
          %v624 = vadd.f32 %v441, %v623
          %v625 = vpop.f32.mrf.mxu0
          %v626 = vadd.f32 %v446, %v625
          %v627 = vpop.f32.mrf.mxu0
          %v628 = vadd.f32 %v446, %v627
          %629 = vmatprep.mubr.bf16.mxu0 0
          %630 = vmatmul.mubr.bf16.gmra.mxu0 %v559
          %v631 = vpop.f32.mrf.mxu0
          %v632 = vadd.f32 %v451, %v631
          %v633 = vpop.f32.mrf.mxu0
          %v634 = vadd.f32 %v451, %v633
          %v635 = vpop.f32.mrf.mxu0
          %v636 = vadd.f32 %v456, %v635
          %v637 = vpop.f32.mrf.mxu0
          %v638 = vadd.f32 %v456, %v637
          %639 = vmatprep.mubr.bf16.mxu0 0
          %640 = vmatmul.mubr.bf16.gmra.mxu0 %v562
          %v641 = vpop.f32.mrf.mxu0
          %v642 = vadd.f32 %v461, %v641
          %v643 = vpop.f32.mrf.mxu0
          %v644 = vadd.f32 %v461, %v643
          %v645 = vpop.f32.mrf.mxu0
          %v646 = vadd.f32 %v466, %v645
          %v647 = vpop.f32.mrf.mxu0
          %v648 = vadd.f32 %v466, %v647
          %649 = vmatprep.mubr.bf16.mxu0 0
          %650 = vmatmul.mubr.bf16.gmra.mxu0 %v565
          %v651 = vpop.f32.mrf.mxu0
          %v652 = vadd.f32 %v471, %v651
          %v653 = vpop.f32.mrf.mxu0
          %v654 = vadd.f32 %v471, %v653
          %v655 = vpop.f32.mrf.mxu0
          %v656 = vadd.f32 %v476, %v655
          %v657 = vpop.f32.mrf.mxu0
          %v658 = vadd.f32 %v476, %v657
          %659 = vdwg.mxu0
          %v660 = vpack.c.bf16 %v606, %v602
          %v661 = vpack.c.bf16 %v608, %v604
          %v662 = vpack.c.bf16 %v616, %v612
          %v663 = vpack.c.bf16 %v618, %v614
          %v668 = vunpack.c.l.b16 %v660
          %v669 = vunpack.c.l.b16 %v661
          %v670 = vunpack.c.h.b16 %v660
          %v671 = vunpack.c.h.b16 %v661
          %v672 = vunpack.c.l.b16 %v662
          %v673 = vunpack.c.l.b16 %v663
          %v674 = vunpack.c.h.b16 %v662
          %v675 = vunpack.c.h.b16 %v663
          %v676 = vpack.c.b16 %v669, %v668
          %v677 = vpack.c.b16 %v671, %v670
          %v678 = vpack.c.b16 %v673, %v672
          %v679 = vpack.c.b16 %v675, %v674
          %684 = vst [vmem:[#allocation2] sm:$0xff] %v676
          %685 = vst [vmem:[#allocation2 + $0x8] sm:$0xff] %v677
          %686 = vst [vmem:[#allocation2 + $0x10] sm:$0xff] %v678
          %687 = vst [vmem:[#allocation2 + $0x18] sm:$0xff] %v679
          %v688 = vpack.c.bf16 %v626, %v622
          %v689 = vpack.c.bf16 %v628, %v624
          %v690 = vpack.c.bf16 %v636, %v632
          %v691 = vpack.c.bf16 %v638, %v634
          %v692 = vpack.c.bf16 %v646, %v642
          %v693 = vpack.c.bf16 %v648, %v644
          %v694 = vpack.c.bf16 %v656, %v652
          %v695 = vpack.c.bf16 %v658, %v654
          %v704 = vunpack.c.l.b16 %v688
          %v705 = vunpack.c.l.b16 %v689
          %v706 = vunpack.c.h.b16 %v688
          %v707 = vunpack.c.h.b16 %v689
          %v708 = vunpack.c.l.b16 %v690
          %v709 = vunpack.c.l.b16 %v691
          %v710 = vunpack.c.h.b16 %v690
          %v711 = vunpack.c.h.b16 %v691
          %v712 = vunpack.c.l.b16 %v692
          %v713 = vunpack.c.l.b16 %v693
          %v714 = vunpack.c.h.b16 %v692
          %v715 = vunpack.c.h.b16 %v693
          %v716 = vunpack.c.l.b16 %v694
          %v717 = vunpack.c.l.b16 %v695
          %v718 = vunpack.c.h.b16 %v694
          %v719 = vunpack.c.h.b16 %v695
          %v720 = vpack.c.b16 %v705, %v704
          %v721 = vpack.c.b16 %v707, %v706
          %v722 = vpack.c.b16 %v709, %v708
          %v723 = vpack.c.b16 %v711, %v710
          %v724 = vpack.c.b16 %v713, %v712
          %v725 = vpack.c.b16 %v715, %v714
          %v726 = vpack.c.b16 %v717, %v716
          %v727 = vpack.c.b16 %v719, %v718
          %736 = vst [vmem:[#allocation3] sm:$0xff] %v720
          %737 = vst [vmem:[#allocation3 + $0x8] sm:$0xff] %v721
          %738 = vst [vmem:[#allocation3 + $0x10] sm:$0xff] %v722
          %739 = vst [vmem:[#allocation3 + $0x18] sm:$0xff] %v723
          %740 = vst [vmem:[#allocation3 + $0x20] sm:$0xff] %v724
          %741 = vst [vmem:[#allocation3 + $0x28] sm:$0xff] %v725
          %742 = vst [vmem:[#allocation3 + $0x30] sm:$0xff] %v726
          %743 = vst [vmem:[#allocation3 + $0x38] sm:$0xff] %v727
        $region94: #{tpu_custom_call.1} parent=81 // pred_fallthru
          _
        %v744 = vld [vmem:[%s348] sm:$0xff]
        %v745 = vld [vmem:[%s348 + $0x8] sm:$0xff]
        %v746 = vld [vmem:[%s348 + $0x10] sm:$0xff]
        %v747 = vld [vmem:[%s348 + $0x18] sm:$0xff]
        %v748 = vld [vmem:[%s348 + $0x20] sm:$0xff]
        %v749 = vld [vmem:[%s348 + $0x28] sm:$0xff]
        %v750 = vld [vmem:[%s348 + $0x30] sm:$0xff]
        %v751 = vld [vmem:[%s348 + $0x38] sm:$0xff]
        %v752 = vld [vmem:[%s4] sm:$0xf]
        %v753 = vld [vmem:[%s4 + $0x4] sm:$0xf]
        %v754 = vld [vmem:[%s4 + $0x8] sm:$0xf]
        %v755 = vld [vmem:[%s4 + $0xc] sm:$0xf]
        %v756 = vpack.c.bf16 %v745, %v744
        %v757 = vpack.c.bf16 %v747, %v746
        %v758 = vpack.c.bf16 %v749, %v748
        %v759 = vpack.c.bf16 %v751, %v750
        %v760 = vld [vmem:[%s5] sm:$0xff]
        %v761 = vld [vmem:[%s5 + $0x8] sm:$0xff]
        %v762 = vld [vmem:[%s5 + $0x10] sm:$0xff]
        %v763 = vld [vmem:[%s5 + $0x18] sm:$0xff]
        %765 = vset.pattern.permute.xlu0 0
        %766 = vperm.xlu0 %765, %v760
        %v767 = vpop.permute.xlu0 %766
        %770 = vset.pattern.permute.xlu0 0
        %771 = vperm.xlu0 %770, %v761
        %v772 = vpop.permute.xlu0 %771
        %775 = vset.pattern.permute.xlu0 0
        %776 = vperm.xlu0 %775, %v762
        %v777 = vpop.permute.xlu0 %776
        %780 = vset.pattern.permute.xlu0 0
        %781 = vperm.xlu0 %780, %v763
        %v782 = vpop.permute.xlu0 %781
        %v788 = vunpack.c.l.b16 %v752
        %v789 = vunpack.c.l.b16 %v753
        %v790 = vunpack.c.l.b16 %v754
        %v791 = vunpack.c.l.b16 %v755
        %v792 = vpack.c.b16 %v789, %v788
        %v793 = vpack.c.b16 %v791, %v790
        %vm794 = vcmask 523264
        %v796 = vsel %vm794, %v792, 0
        %v799 = vsel %vm794, %v793, 0
        %801 = vmatprep.subr.bf16.mxu0 0
        %802 = vmatpush1.bf16.msra.mxu0 0
        %803 = vmatprep.subr.bf16.mxu0 0
        %804 = vmatpush1.bf16.msra.mxu0 0
        %805 = vmatprep.subr.bf16.mxu0 0
        %806 = vmatpush1.bf16.msra.mxu0 0
        %807 = vmatprep.subr.bf16.mxu0 0
        %808 = vmatpush1.bf16.msra.mxu0 0
        %809 = vmatprep.subr.bf16.mxu0 0
        %810 = vmatpush1.bf16.msra.mxu0 %v759
        %811 = vmatprep.subr.bf16.mxu0 0
        %812 = vmatpush1.bf16.msra.mxu0 %v758
        %813 = vmatprep.subr.bf16.mxu0 0
        %814 = vmatpush1.bf16.msra.mxu0 %v757
        %815 = vmatprep.subr.bf16.mxu0 0
        %816 = vmatpush1.bf16.msra.mxu0 %v756
        %817 = vmatprep.subr.bf16.mxu0 0
        %818 = vmatpush2.bf16.msra.mxu0 0
        %819 = vmatprep.subr.bf16.mxu0 0
        %820 = vmatpush2.bf16.msra.mxu0 0
        %821 = vmatprep.subr.bf16.mxu0 0
        %822 = vmatpush2.bf16.msra.mxu0 0
        %823 = vmatprep.subr.bf16.mxu0 0
        %824 = vmatpush2.bf16.msra.mxu0 0
        %825 = vmatprep.subr.bf16.mxu0 0
        %826 = vmatpush2.bf16.msra.mxu0 0
        %827 = vmatprep.subr.bf16.mxu0 0
        %828 = vmatpush2.bf16.msra.mxu0 0
        %829 = vmatprep.subr.bf16.mxu0 0
        %830 = vmatpush2.bf16.msra.mxu0 0
        %831 = vmatprep.subr.bf16.mxu0 0
        %832 = vmatpush2.bf16.msra.mxu0 0
        %833 = vmatprep.mubr.bf16.mxu0 0
        %834 = vmatmul.mubr.bf16.gmra.mxu0 %v796
        %v835 = vpop.f32.mrf.mxu0
        %v836 = vadd.f32 %v767, %v835
        %v837 = vpop.f32.mrf.mxu0
        %v838 = vpop.f32.mrf.mxu0
        %v839 = vadd.f32 %v772, %v838
        %v840 = vpop.f32.mrf.mxu0
        %841 = vmatprep.mubr.bf16.mxu0 0
        %842 = vmatmul.mubr.bf16.gmra.mxu0 %v799
        %v843 = vpop.f32.mrf.mxu0
        %v844 = vadd.f32 %v777, %v843
        %v845 = vpop.f32.mrf.mxu0
        %v846 = vpop.f32.mrf.mxu0
        %v847 = vadd.f32 %v782, %v846
        %v848 = vpop.f32.mrf.mxu0
        %849 = vdwg.mxu0
        %v850 = vpack.c.bf16 %v839, %v836
        %v851 = vpack.c.bf16 %v847, %v844
        %v852 = vld [vmem:[#allocation2] sm:$0xff]
        %v853 = vld [vmem:[#allocation2 + $0x8] sm:$0xff]
        %v854 = vld [vmem:[#allocation2 + $0x10] sm:$0xff]
        %v855 = vld [vmem:[#allocation2 + $0x18] sm:$0xff]
        %856 = vxpose.xlu0.c.b16.start [1/8] %v850, 128
        %857 = vxpose.xlu0.c.b16.cont [2/8] %v851, 128
        %858 = vxpose.xlu0.c.b16.cont [3/8] 0, 128
        %859 = vxpose.xlu0.c.b16.cont [4/8] 0, 128
        %860 = vxpose.xlu0.c.b16.cont [5/8] 0, 128
        %861 = vxpose.xlu0.c.b16.cont [6/8] 0, 128
        %862 = vxpose.xlu0.c.b16.cont [7/8] 0, 128
        %863 = vxpose.xlu0.c.b16.end [8/8] 0, 128
        %v864 = vpop.trf.xlu0
        %v865 = vpop.trf.xlu0
        %v866 = vpop.trf.xlu0
        %v867 = vpop.trf.xlu0
        %v868 = vpop.trf.xlu0
        %v869 = vpop.trf.xlu0
        %v870 = vpop.trf.xlu0
        %v871 = vpop.trf.xlu0
        %v876 = vunpack.c.l.b16 %v852
        %v877 = vunpack.c.h.b16 %v852
        %v878 = vunpack.c.l.b16 %v853
        %v879 = vunpack.c.h.b16 %v853
        %v880 = vunpack.c.l.b16 %v854
        %v881 = vunpack.c.h.b16 %v854
        %v882 = vunpack.c.l.b16 %v855
        %v883 = vunpack.c.h.b16 %v855
        %v884 = vpack.c.b16 %v878, %v876
        %v885 = vpack.c.b16 %v879, %v877
        %v886 = vpack.c.b16 %v882, %v880
        %v887 = vpack.c.b16 %v883, %v881
        %vm892 = vcmask 261120
        %v894 = vsel %vm892, %v864, 0
        %v897 = vsel %vm892, %v865, 0
        %v900 = vsel %vm892, %v866, 0
        %v903 = vsel %vm892, %v867, 0
        %v906 = vsel %vm892, %v868, 0
        %v909 = vsel %vm892, %v869, 0
        %v912 = vsel %vm892, %v870, 0
        %v915 = vsel %vm892, %v871, 0
        %917 = vmatprep.subr.bf16.mxu0 0
        %918 = vmatpush1.bf16.msra.mxu0 0
        %919 = vmatprep.subr.bf16.mxu0 0
        %920 = vmatpush1.bf16.msra.mxu0 0
        %921 = vmatprep.subr.bf16.mxu0 0
        %922 = vmatpush1.bf16.msra.mxu0 0
        %923 = vmatprep.subr.bf16.mxu0 0
        %924 = vmatpush1.bf16.msra.mxu0 0
        %925 = vmatprep.subr.bf16.mxu0 0
        %926 = vmatpush1.bf16.msra.mxu0 0
        %927 = vmatprep.subr.bf16.mxu0 0
        %928 = vmatpush1.bf16.msra.mxu0 0
        %929 = vmatprep.subr.bf16.mxu0 %v887
        %930 = vmatpush1.bf16.msra.mxu0 %v886
        %931 = vmatprep.subr.bf16.mxu0 %v885
        %932 = vmatpush1.bf16.msra.mxu0 %v884
        %933 = vmatprep.subr.bf16.mxu0 0
        %934 = vmatpush2.bf16.msra.mxu0 0
        %935 = vmatprep.subr.bf16.mxu0 0
        %936 = vmatpush2.bf16.msra.mxu0 0
        %937 = vmatprep.subr.bf16.mxu0 0
        %938 = vmatpush2.bf16.msra.mxu0 0
        %939 = vmatprep.subr.bf16.mxu0 0
        %940 = vmatpush2.bf16.msra.mxu0 0
        %941 = vmatprep.subr.bf16.mxu0 0
        %942 = vmatpush2.bf16.msra.mxu0 0
        %943 = vmatprep.subr.bf16.mxu0 0
        %944 = vmatpush2.bf16.msra.mxu0 0
        %945 = vmatprep.subr.bf16.mxu0 0
        %946 = vmatpush2.bf16.msra.mxu0 0
        %947 = vmatprep.subr.bf16.mxu0 0
        %948 = vmatpush2.bf16.msra.mxu0 0
        %949 = vmatprep.mubr.bf16.mxu0 0
        %950 = vmatmul.mubr.bf16.gmra.mxu0 %v894
        %v951 = vpop.f32.mrf.mxu0
        %v952 = vadd.f32 0.0, %v951
        %v953 = vpop.f32.mrf.mxu0
        %v954 = vadd.f32 0.0, %v953
        %v955 = vpop.f32.mrf.mxu0
        %v956 = vadd.f32 0.0, %v955
        %v957 = vpop.f32.mrf.mxu0
        %v958 = vadd.f32 0.0, %v957
        %959 = vmatprep.mubr.bf16.mxu0 0
        %960 = vmatmul.mubr.bf16.gmra.mxu0 %v897
        %v961 = vpop.f32.mrf.mxu0
        %v962 = vadd.f32 0.0, %v961
        %v963 = vpop.f32.mrf.mxu0
        %v964 = vadd.f32 0.0, %v963
        %v965 = vpop.f32.mrf.mxu0
        %v966 = vadd.f32 0.0, %v965
        %v967 = vpop.f32.mrf.mxu0
        %v968 = vadd.f32 0.0, %v967
        %969 = vmatprep.mubr.bf16.mxu0 0
        %970 = vmatmul.mubr.bf16.gmra.mxu0 %v900
        %v971 = vpop.f32.mrf.mxu0
        %v972 = vadd.f32 0.0, %v971
        %v973 = vpop.f32.mrf.mxu0
        %v974 = vadd.f32 0.0, %v973
        %v975 = vpop.f32.mrf.mxu0
        %v976 = vadd.f32 0.0, %v975
        %v977 = vpop.f32.mrf.mxu0
        %v978 = vadd.f32 0.0, %v977
        %979 = vmatprep.mubr.bf16.mxu0 0
        %980 = vmatmul.mubr.bf16.gmra.mxu0 %v903
        %v981 = vpop.f32.mrf.mxu0
        %v982 = vadd.f32 0.0, %v981
        %v983 = vpop.f32.mrf.mxu0
        %v984 = vadd.f32 0.0, %v983
        %v985 = vpop.f32.mrf.mxu0
        %v986 = vadd.f32 0.0, %v985
        %v987 = vpop.f32.mrf.mxu0
        %v988 = vadd.f32 0.0, %v987
        %989 = vmatprep.mubr.bf16.mxu0 0
        %990 = vmatmul.mubr.bf16.gmra.mxu0 %v906
        %v991 = vpop.f32.mrf.mxu0
        %v992 = vadd.f32 0.0, %v991
        %v993 = vpop.f32.mrf.mxu0
        %v994 = vadd.f32 0.0, %v993
        %v995 = vpop.f32.mrf.mxu0
        %v996 = vadd.f32 0.0, %v995
        %v997 = vpop.f32.mrf.mxu0
        %v998 = vadd.f32 0.0, %v997
        %999 = vmatprep.mubr.bf16.mxu0 0
        %1000 = vmatmul.mubr.bf16.gmra.mxu0 %v909
        %v1001 = vpop.f32.mrf.mxu0
        %v1002 = vadd.f32 0.0, %v1001
        %v1003 = vpop.f32.mrf.mxu0
        %v1004 = vadd.f32 0.0, %v1003
        %v1005 = vpop.f32.mrf.mxu0
        %v1006 = vadd.f32 0.0, %v1005
        %v1007 = vpop.f32.mrf.mxu0
        %v1008 = vadd.f32 0.0, %v1007
        %1009 = vmatprep.mubr.bf16.mxu0 0
        %1010 = vmatmul.mubr.bf16.gmra.mxu0 %v912
        %v1011 = vpop.f32.mrf.mxu0
        %v1012 = vadd.f32 0.0, %v1011
        %v1013 = vpop.f32.mrf.mxu0
        %v1014 = vadd.f32 0.0, %v1013
        %v1015 = vpop.f32.mrf.mxu0
        %v1016 = vadd.f32 0.0, %v1015
        %v1017 = vpop.f32.mrf.mxu0
        %v1018 = vadd.f32 0.0, %v1017
        %1019 = vmatprep.mubr.bf16.mxu0 0
        %1020 = vmatmul.mubr.bf16.gmra.mxu0 %v915
        %v1021 = vpop.f32.mrf.mxu0
        %v1022 = vadd.f32 0.0, %v1021
        %v1023 = vpop.f32.mrf.mxu0
        %v1024 = vadd.f32 0.0, %v1023
        %v1025 = vpop.f32.mrf.mxu0
        %v1026 = vadd.f32 0.0, %v1025
        %v1027 = vpop.f32.mrf.mxu0
        %v1028 = vadd.f32 0.0, %v1027
        %1029 = vdwg.mxu0
        %v1030 = vmax.f32 %v952, %v954
        %1031 = vmax.xlane.f32.xlu0 %v1030
        %v1032 = vpop.xlane.xlu0 %1031
        %v1033 = vmax.f32 %v956, %v958
        %1034 = vmax.xlane.f32.xlu0 %v1033
        %v1035 = vpop.xlane.xlu0 %1034
        %v1036 = vmax.f32 %v962, %v964
        %1037 = vmax.xlane.f32.xlu0 %v1036
        %v1038 = vpop.xlane.xlu0 %1037
        %v1039 = vmax.f32 %v966, %v968
        %1040 = vmax.xlane.f32.xlu0 %v1039
        %v1041 = vpop.xlane.xlu0 %1040
        %v1042 = vmax.f32 %v972, %v974
        %1043 = vmax.xlane.f32.xlu0 %v1042
        %v1044 = vpop.xlane.xlu0 %1043
        %v1045 = vmax.f32 %v976, %v978
        %1046 = vmax.xlane.f32.xlu0 %v1045
        %v1047 = vpop.xlane.xlu0 %1046
        %v1048 = vmax.f32 %v982, %v984
        %1049 = vmax.xlane.f32.xlu0 %v1048
        %v1050 = vpop.xlane.xlu0 %1049
        %v1051 = vmax.f32 %v986, %v988
        %1052 = vmax.xlane.f32.xlu0 %v1051
        %v1053 = vpop.xlane.xlu0 %1052
        %v1054 = vmax.f32 %v992, %v994
        %1055 = vmax.xlane.f32.xlu0 %v1054
        %v1056 = vpop.xlane.xlu0 %1055
        %v1057 = vmax.f32 %v996, %v998
        %1058 = vmax.xlane.f32.xlu0 %v1057
        %v1059 = vpop.xlane.xlu0 %1058
        %v1060 = vmax.f32 %v1002, %v1004
        %1061 = vmax.xlane.f32.xlu0 %v1060
        %v1062 = vpop.xlane.xlu0 %1061
        %v1063 = vmax.f32 %v1006, %v1008
        %1064 = vmax.xlane.f32.xlu0 %v1063
        %v1065 = vpop.xlane.xlu0 %1064
        %v1066 = vmax.f32 %v1012, %v1014
        %1067 = vmax.xlane.f32.xlu0 %v1066
        %v1068 = vpop.xlane.xlu0 %1067
        %v1069 = vmax.f32 %v1016, %v1018
        %1070 = vmax.xlane.f32.xlu0 %v1069
        %v1071 = vpop.xlane.xlu0 %1070
        %v1072 = vmax.f32 %v1022, %v1024
        %1073 = vmax.xlane.f32.xlu0 %v1072
        %v1074 = vpop.xlane.xlu0 %1073
        %v1075 = vmax.f32 %v1026, %v1028
        %1076 = vmax.xlane.f32.xlu0 %v1075
        %v1077 = vpop.xlane.xlu0 %1076
        %v1078 = vsub.f32 %v952, %v1032
        %v1079 = vsub.f32 %v954, %v1032
        %v1080 = vsub.f32 %v956, %v1035
        %v1081 = vsub.f32 %v958, %v1035
        %v1082 = vsub.f32 %v962, %v1038
        %v1083 = vsub.f32 %v964, %v1038
        %v1084 = vsub.f32 %v966, %v1041
        %v1085 = vsub.f32 %v968, %v1041
        %v1086 = vsub.f32 %v972, %v1044
        %v1087 = vsub.f32 %v974, %v1044
        %v1088 = vsub.f32 %v976, %v1047
        %v1089 = vsub.f32 %v978, %v1047
        %v1090 = vsub.f32 %v982, %v1050
        %v1091 = vsub.f32 %v984, %v1050
        %v1092 = vsub.f32 %v986, %v1053
        %v1093 = vsub.f32 %v988, %v1053
        %v1094 = vsub.f32 %v992, %v1056
        %v1095 = vsub.f32 %v994, %v1056
        %v1096 = vsub.f32 %v996, %v1059
        %v1097 = vsub.f32 %v998, %v1059
        %v1098 = vsub.f32 %v1002, %v1062
        %v1099 = vsub.f32 %v1004, %v1062
        %v1100 = vsub.f32 %v1006, %v1065
        %v1101 = vsub.f32 %v1008, %v1065
        %v1102 = vsub.f32 %v1012, %v1068
        %v1103 = vsub.f32 %v1014, %v1068
        %v1104 = vsub.f32 %v1016, %v1071
        %v1105 = vsub.f32 %v1018, %v1071
        %v1106 = vsub.f32 %v1022, %v1074
        %v1107 = vsub.f32 %v1024, %v1074
        %v1108 = vsub.f32 %v1026, %v1077
        %v1109 = vsub.f32 %v1028, %v1077
        %v1110 = vmul.f32 %v1078, 1.442695
        %v1111 = vpow.pop %v1110
        %v1112 = vmul.f32 %v1079, 1.442695
        %v1113 = vpow.pop %v1112
        %v1114 = vmul.f32 %v1080, 1.442695
        %v1115 = vpow.pop %v1114
        %v1116 = vmul.f32 %v1081, 1.442695
        %v1117 = vpow.pop %v1116
        %v1118 = vmul.f32 %v1082, 1.442695
        %v1119 = vpow.pop %v1118
        %v1120 = vmul.f32 %v1083, 1.442695
        %v1121 = vpow.pop %v1120
        %v1122 = vmul.f32 %v1084, 1.442695
        %v1123 = vpow.pop %v1122
        %v1124 = vmul.f32 %v1085, 1.442695
        %v1125 = vpow.pop %v1124
        %v1126 = vmul.f32 %v1086, 1.442695
        %v1127 = vpow.pop %v1126
        %v1128 = vmul.f32 %v1087, 1.442695
        %v1129 = vpow.pop %v1128
        %v1130 = vmul.f32 %v1088, 1.442695
        %v1131 = vpow.pop %v1130
        %v1132 = vmul.f32 %v1089, 1.442695
        %v1133 = vpow.pop %v1132
        %v1134 = vmul.f32 %v1090, 1.442695
        %v1135 = vpow.pop %v1134
        %v1136 = vmul.f32 %v1091, 1.442695
        %v1137 = vpow.pop %v1136
        %v1138 = vmul.f32 %v1092, 1.442695
        %v1139 = vpow.pop %v1138
        %v1140 = vmul.f32 %v1093, 1.442695
        %v1141 = vpow.pop %v1140
        %v1142 = vmul.f32 %v1094, 1.442695
        %v1143 = vpow.pop %v1142
        %v1144 = vmul.f32 %v1095, 1.442695
        %v1145 = vpow.pop %v1144
        %v1146 = vmul.f32 %v1096, 1.442695
        %v1147 = vpow.pop %v1146
        %v1148 = vmul.f32 %v1097, 1.442695
        %v1149 = vpow.pop %v1148
        %v1150 = vmul.f32 %v1098, 1.442695
        %v1151 = vpow.pop %v1150
        %v1152 = vmul.f32 %v1099, 1.442695
        %v1153 = vpow.pop %v1152
        %v1154 = vmul.f32 %v1100, 1.442695
        %v1155 = vpow.pop %v1154
        %v1156 = vmul.f32 %v1101, 1.442695
        %v1157 = vpow.pop %v1156
        %v1158 = vmul.f32 %v1102, 1.442695
        %v1159 = vpow.pop %v1158
        %v1160 = vmul.f32 %v1103, 1.442695
        %v1161 = vpow.pop %v1160
        %v1162 = vmul.f32 %v1104, 1.442695
        %v1163 = vpow.pop %v1162
        %v1164 = vmul.f32 %v1105, 1.442695
        %v1165 = vpow.pop %v1164
        %v1166 = vmul.f32 %v1106, 1.442695
        %v1167 = vpow.pop %v1166
        %v1168 = vmul.f32 %v1107, 1.442695
        %v1169 = vpow.pop %v1168
        %v1170 = vmul.f32 %v1108, 1.442695
        %v1171 = vpow.pop %v1170
        %v1172 = vmul.f32 %v1109, 1.442695
        %v1173 = vpow.pop %v1172
        %v1174 = vadd.f32 %v1111, %v1113
        %1175 = vadd.xlane.f32.xlu0 %v1174
        %v1176 = vpop.xlane.xlu0 %1175
        %v1177 = vadd.f32 %v1115, %v1117
        %1178 = vadd.xlane.f32.xlu0 %v1177
        %v1179 = vpop.xlane.xlu0 %1178
        %v1180 = vadd.f32 %v1119, %v1121
        %1181 = vadd.xlane.f32.xlu0 %v1180
        %v1182 = vpop.xlane.xlu0 %1181
        %v1183 = vadd.f32 %v1123, %v1125
        %1184 = vadd.xlane.f32.xlu0 %v1183
        %v1185 = vpop.xlane.xlu0 %1184
        %v1186 = vadd.f32 %v1127, %v1129
        %1187 = vadd.xlane.f32.xlu0 %v1186
        %v1188 = vpop.xlane.xlu0 %1187
        %v1189 = vadd.f32 %v1131, %v1133
        %1190 = vadd.xlane.f32.xlu0 %v1189
        %v1191 = vpop.xlane.xlu0 %1190
        %v1192 = vadd.f32 %v1135, %v1137
        %1193 = vadd.xlane.f32.xlu0 %v1192
        %v1194 = vpop.xlane.xlu0 %1193
        %v1195 = vadd.f32 %v1139, %v1141
        %1196 = vadd.xlane.f32.xlu0 %v1195
        %v1197 = vpop.xlane.xlu0 %1196
        %v1198 = vadd.f32 %v1143, %v1145
        %1199 = vadd.xlane.f32.xlu0 %v1198
        %v1200 = vpop.xlane.xlu0 %1199
        %v1201 = vadd.f32 %v1147, %v1149
        %1202 = vadd.xlane.f32.xlu0 %v1201
        %v1203 = vpop.xlane.xlu0 %1202
        %v1204 = vadd.f32 %v1151, %v1153
        %1205 = vadd.xlane.f32.xlu0 %v1204
        %v1206 = vpop.xlane.xlu0 %1205
        %v1207 = vadd.f32 %v1155, %v1157
        %1208 = vadd.xlane.f32.xlu0 %v1207
        %v1209 = vpop.xlane.xlu0 %1208
        %v1210 = vadd.f32 %v1159, %v1161
        %1211 = vadd.xlane.f32.xlu0 %v1210
        %v1212 = vpop.xlane.xlu0 %1211
        %v1213 = vadd.f32 %v1163, %v1165
        %1214 = vadd.xlane.f32.xlu0 %v1213
        %v1215 = vpop.xlane.xlu0 %1214
        %v1216 = vadd.f32 %v1167, %v1169
        %1217 = vadd.xlane.f32.xlu0 %v1216
        %v1218 = vpop.xlane.xlu0 %1217
        %v1219 = vadd.f32 %v1171, %v1173
        %1220 = vadd.xlane.f32.xlu0 %v1219
        %v1221 = vpop.xlane.xlu0 %1220
        %v1222 = vrcp.pop %v1176
        %v1223 = vrcp.pop %v1179
        %v1224 = vrcp.pop %v1182
        %v1225 = vrcp.pop %v1185
        %v1226 = vrcp.pop %v1188
        %v1227 = vrcp.pop %v1191
        %v1228 = vrcp.pop %v1194
        %v1229 = vrcp.pop %v1197
        %v1230 = vrcp.pop %v1200
        %v1231 = vrcp.pop %v1203
        %v1232 = vrcp.pop %v1206
        %v1233 = vrcp.pop %v1209
        %v1234 = vrcp.pop %v1212
        %v1235 = vrcp.pop %v1215
        %v1236 = vrcp.pop %v1218
        %v1237 = vrcp.pop %v1221
        %v1238 = vmul.f32 %v1111, %v1222
        %v1239 = vmul.f32 %v1113, %v1222
        %v1240 = vmul.f32 %v1115, %v1223
        %v1241 = vmul.f32 %v1117, %v1223
        %v1242 = vmul.f32 %v1119, %v1224
        %v1243 = vmul.f32 %v1121, %v1224
        %v1244 = vmul.f32 %v1123, %v1225
        %v1245 = vmul.f32 %v1125, %v1225
        %v1246 = vmul.f32 %v1127, %v1226
        %v1247 = vmul.f32 %v1129, %v1226
        %v1248 = vmul.f32 %v1131, %v1227
        %v1249 = vmul.f32 %v1133, %v1227
        %v1250 = vmul.f32 %v1135, %v1228
        %v1251 = vmul.f32 %v1137, %v1228
        %v1252 = vmul.f32 %v1139, %v1229
        %v1253 = vmul.f32 %v1141, %v1229
        %v1254 = vmul.f32 %v1143, %v1230
        %v1255 = vmul.f32 %v1145, %v1230
        %v1256 = vmul.f32 %v1147, %v1231
        %v1257 = vmul.f32 %v1149, %v1231
        %v1258 = vmul.f32 %v1151, %v1232
        %v1259 = vmul.f32 %v1153, %v1232
        %v1260 = vmul.f32 %v1155, %v1233
        %v1261 = vmul.f32 %v1157, %v1233
        %v1262 = vmul.f32 %v1159, %v1234
        %v1263 = vmul.f32 %v1161, %v1234
        %v1264 = vmul.f32 %v1163, %v1235
        %v1265 = vmul.f32 %v1165, %v1235
        %v1266 = vmul.f32 %v1167, %v1236
        %v1267 = vmul.f32 %v1169, %v1236
        %v1268 = vmul.f32 %v1171, %v1237
        %v1269 = vmul.f32 %v1173, %v1237
        %v1270 = vpack.c.bf16 %v1240, %v1238
        %v1271 = vpack.c.bf16 %v1241, %v1239
        %v1272 = vpack.c.bf16 %v1244, %v1242
        %v1273 = vpack.c.bf16 %v1245, %v1243
        %v1274 = vpack.c.bf16 %v1248, %v1246
        %v1275 = vpack.c.bf16 %v1249, %v1247
        %v1276 = vpack.c.bf16 %v1252, %v1250
        %v1277 = vpack.c.bf16 %v1253, %v1251
        %v1278 = vpack.c.bf16 %v1256, %v1254
        %v1279 = vpack.c.bf16 %v1257, %v1255
        %v1280 = vpack.c.bf16 %v1260, %v1258
        %v1281 = vpack.c.bf16 %v1261, %v1259
        %v1282 = vpack.c.bf16 %v1264, %v1262
        %v1283 = vpack.c.bf16 %v1265, %v1263
        %v1284 = vpack.c.bf16 %v1268, %v1266
        %v1285 = vpack.c.bf16 %v1269, %v1267
        %v1286 = vld [vmem:[#allocation3] sm:$0xff]
        %v1287 = vld [vmem:[#allocation3 + $0x8] sm:$0xff]
        %v1288 = vld [vmem:[#allocation3 + $0x10] sm:$0xff]
        %v1289 = vld [vmem:[#allocation3 + $0x18] sm:$0xff]
        %v1290 = vld [vmem:[#allocation3 + $0x20] sm:$0xff]
        %v1291 = vld [vmem:[#allocation3 + $0x28] sm:$0xff]
        %v1292 = vld [vmem:[#allocation3 + $0x30] sm:$0xff]
        %v1293 = vld [vmem:[#allocation3 + $0x38] sm:$0xff]
        %v1294 = vld [vmem:[%s6] sm:$0xff]
        %v1295 = vld [vmem:[%s6 + $0x8] sm:$0xff]
        %v1296 = vld [vmem:[%s6 + $0x10] sm:$0xff]
        %v1297 = vld [vmem:[%s6 + $0x18] sm:$0xff]
        %v1298 = vld [vmem:[%s6 + $0x20] sm:$0xff]
        %v1299 = vld [vmem:[%s6 + $0x28] sm:$0xff]
        %v1300 = vld [vmem:[%s6 + $0x30] sm:$0xff]
        %v1301 = vld [vmem:[%s6 + $0x38] sm:$0xff]
        %1303 = vset.pattern.permute.xlu0 0
        %1304 = vperm.xlu0 %1303, %v1294
        %v1305 = vpop.permute.xlu0 %1304
        %1308 = vset.pattern.permute.xlu0 0
        %1309 = vperm.xlu0 %1308, %v1295
        %v1310 = vpop.permute.xlu0 %1309
        %1313 = vset.pattern.permute.xlu0 0
        %1314 = vperm.xlu0 %1313, %v1296
        %v1315 = vpop.permute.xlu0 %1314
        %1318 = vset.pattern.permute.xlu0 0
        %1319 = vperm.xlu0 %1318, %v1297
        %v1320 = vpop.permute.xlu0 %1319
        %1323 = vset.pattern.permute.xlu0 0
        %1324 = vperm.xlu0 %1323, %v1298
        %v1325 = vpop.permute.xlu0 %1324
        %1328 = vset.pattern.permute.xlu0 0
        %1329 = vperm.xlu0 %1328, %v1299
        %v1330 = vpop.permute.xlu0 %1329
        %1333 = vset.pattern.permute.xlu0 0
        %1334 = vperm.xlu0 %1333, %v1300
        %v1335 = vpop.permute.xlu0 %1334
        %1338 = vset.pattern.permute.xlu0 0
        %1339 = vperm.xlu0 %1338, %v1301
        %v1340 = vpop.permute.xlu0 %1339
        %v1350 = vunpack.c.l.b16 %v1286
        %v1351 = vunpack.c.h.b16 %v1286
        %v1352 = vunpack.c.l.b16 %v1287
        %v1353 = vunpack.c.h.b16 %v1287
        %v1354 = vunpack.c.l.b16 %v1288
        %v1355 = vunpack.c.h.b16 %v1288
        %v1356 = vunpack.c.l.b16 %v1289
        %v1357 = vunpack.c.h.b16 %v1289
        %v1358 = vunpack.c.l.b16 %v1290
        %v1359 = vunpack.c.h.b16 %v1290
        %v1360 = vunpack.c.l.b16 %v1291
        %v1361 = vunpack.c.h.b16 %v1291
        %v1362 = vunpack.c.l.b16 %v1292
        %v1363 = vunpack.c.h.b16 %v1292
        %v1364 = vunpack.c.l.b16 %v1293
        %v1365 = vunpack.c.h.b16 %v1293
        %v1366 = vpack.c.b16 %v1352, %v1350
        %v1367 = vpack.c.b16 %v1353, %v1351
        %v1368 = vpack.c.b16 %v1356, %v1354
        %v1369 = vpack.c.b16 %v1357, %v1355
        %v1370 = vpack.c.b16 %v1360, %v1358
        %v1371 = vpack.c.b16 %v1361, %v1359
        %v1372 = vpack.c.b16 %v1364, %v1362
        %v1373 = vpack.c.b16 %v1365, %v1363
        %1382 = vmatprep.subr.bf16.mxu0 %v1285
        %1383 = vmatpush1.bf16.xpose.msra.mxu0 %v1284
        %1384 = vmatprep.subr.bf16.mxu0 %v1283
        %1385 = vmatpush1.bf16.xpose.msra.mxu0 %v1282
        %1386 = vmatprep.subr.bf16.mxu0 %v1281
        %1387 = vmatpush1.bf16.xpose.msra.mxu0 %v1280
        %1388 = vmatprep.subr.bf16.mxu0 %v1279
        %1389 = vmatpush1.bf16.xpose.msra.mxu0 %v1278
        %1390 = vmatprep.subr.bf16.mxu0 %v1277
        %1391 = vmatpush1.bf16.xpose.msra.mxu0 %v1276
        %1392 = vmatprep.subr.bf16.mxu0 %v1275
        %1393 = vmatpush1.bf16.xpose.msra.mxu0 %v1274
        %1394 = vmatprep.subr.bf16.mxu0 %v1273
        %1395 = vmatpush1.bf16.xpose.msra.mxu0 %v1272
        %1396 = vmatprep.subr.bf16.mxu0 %v1271
        %1397 = vmatpush1.bf16.xpose.msra.mxu0 %v1270
        %1398 = vmatprep.subr.bf16.mxu0 0
        %1399 = vmatpush2.bf16.xpose.msra.mxu0 0
        %1400 = vmatprep.subr.bf16.mxu0 0
        %1401 = vmatpush2.bf16.xpose.msra.mxu0 0
        %1402 = vmatprep.subr.bf16.mxu0 0
        %1403 = vmatpush2.bf16.xpose.msra.mxu0 0
        %1404 = vmatprep.subr.bf16.mxu0 0
        %1405 = vmatpush2.bf16.xpose.msra.mxu0 0
        %1406 = vmatprep.subr.bf16.mxu0 0
        %1407 = vmatpush2.bf16.xpose.msra.mxu0 0
        %1408 = vmatprep.subr.bf16.mxu0 0
        %1409 = vmatpush2.bf16.xpose.msra.mxu0 0
        %1410 = vmatprep.subr.bf16.mxu0 0
        %1411 = vmatpush2.bf16.xpose.msra.mxu0 0
        %1412 = vmatprep.subr.bf16.mxu0 0
        %1413 = vmatpush2.bf16.xpose.msra.mxu0 0
        %1414 = vmatprep.mubr.bf16.mxu0 %v1367
        %1415 = vmatmul.mubr.bf16.gmra.mxu0 %v1366
        %v1416 = vpop.f32.mrf.mxu0
        %v1417 = vadd.f32 %v1305, %v1416
        %v1418 = vpop.f32.mrf.mxu0
        %v1419 = vpop.f32.mrf.mxu0
        %v1420 = vadd.f32 %v1310, %v1419
        %v1421 = vpop.f32.mrf.mxu0
        %1422 = vmatprep.mubr.bf16.mxu0 %v1369
        %1423 = vmatmul.mubr.bf16.gmra.mxu0 %v1368
        %v1424 = vpop.f32.mrf.mxu0
        %v1425 = vadd.f32 %v1315, %v1424
        %v1426 = vpop.f32.mrf.mxu0
        %v1427 = vpop.f32.mrf.mxu0
        %v1428 = vadd.f32 %v1320, %v1427
        %v1429 = vpop.f32.mrf.mxu0
        %1430 = vmatprep.mubr.bf16.mxu0 %v1371
        %1431 = vmatmul.mubr.bf16.gmra.mxu0 %v1370
        %v1432 = vpop.f32.mrf.mxu0
        %v1433 = vadd.f32 %v1325, %v1432
        %v1434 = vpop.f32.mrf.mxu0
        %v1435 = vpop.f32.mrf.mxu0
        %v1436 = vadd.f32 %v1330, %v1435
        %v1437 = vpop.f32.mrf.mxu0
        %1438 = vmatprep.mubr.bf16.mxu0 %v1373
        %1439 = vmatmul.mubr.bf16.gmra.mxu0 %v1372
        %v1440 = vpop.f32.mrf.mxu0
        %v1441 = vadd.f32 %v1335, %v1440
        %v1442 = vpop.f32.mrf.mxu0
        %v1443 = vpop.f32.mrf.mxu0
        %v1444 = vadd.f32 %v1340, %v1443
        %v1445 = vpop.f32.mrf.mxu0
        %1446 = vdwg.mxu0
        %v1447 = vadd.f32 %v744, %v1417
        %v1448 = vadd.f32 %v745, %v1420
        %v1449 = vadd.f32 %v746, %v1425
        %v1450 = vadd.f32 %v747, %v1428
        %v1451 = vadd.f32 %v748, %v1433
        %v1452 = vadd.f32 %v749, %v1436
        %v1453 = vadd.f32 %v750, %v1441
        %v1454 = vadd.f32 %v751, %v1444
        %1455 = vst [vmem:[%s380] sm:$0xff] %v1447
        %1456 = vst [vmem:[%s380 + $0x8] sm:$0xff] %v1448
        %1457 = vst [vmem:[%s380 + $0x10] sm:$0xff] %v1449
        %1458 = vst [vmem:[%s380 + $0x18] sm:$0xff] %v1450
        %1459 = vst [vmem:[%s380 + $0x20] sm:$0xff] %v1451
        %1460 = vst [vmem:[%s380 + $0x28] sm:$0xff] %v1452
        %1461 = vst [vmem:[%s380 + $0x30] sm:$0xff] %v1453
        %1462 = vst [vmem:[%s380 + $0x38] sm:$0xff] %v1454
        %s1463 = sand.u32 %s203, 1
        %s1464 = scalar_lea.sflag [#allocation7], %s1463
        %s1465 = sand.u32 %s203, 1
        %s1466 = smul.addr %s1465, 64
        %s1467 = scalar_lea.vmem [#allocation8], %s1466
        // Predicated region
        $region95: #{tpu_custom_call.1} parent=81 // pred_check
          %p1468 = pneg %p213
        $region96: #{tpu_custom_call.1} parent=81 // pred_check_branch
          %1470 = sbr.rel (%p1468) target = $region98
        $region97: #{tpu_custom_call.1} parent=81 // pred_region
          %s1472 = ssub.s32 1024, 1024
          %1473 = vsyncadd %s1464, %s1472
          %s1474 = smul.addr %s26, 16
          %s1475 = sadd.s32 %s27, %s1474
          %s1476 = smul.addr %s1475, 128
          %s1477 = scalar_lea.hbm %s7, %s1476
          %s1478 = sshll.u32 %s1467, 4
          %s1479 = int_to_ptr.vmem [resolvable:$true] %s1478
          %1484 = dma.vmem_to_hbm [thread:$0]  %s1479, 1024, %s1477, %s1464, 128, 256, 8
        $region98: #{tpu_custom_call.1} parent=81 // pred_fallthru
          _
      $region82: #{tpu_custom_call.1} parent=5 // pred_fallthru
        _
      %p1485 = scmp.le.s32.totalorder 2, %s17
      // Predicated region
      $region99: #{tpu_custom_call.1} parent=5 // pred_check
        %p1486 = pneg %p1485
      $region100: #{tpu_custom_call.1} parent=5 // pred_check_branch
        %1488 = sbr.rel (%p1486) target = $region102
      $region101: #{tpu_custom_call.1} parent=5 // pred_region
        %s1489 = ssub.s32 %s17, 2
        // Predicated region
        $region103: #{tpu_custom_call.1} parent=101 // pred_check
          %p1490 = pneg %p219
        $region104: #{tpu_custom_call.1} parent=101 // pred_check_branch
          %1492 = sbr.rel (%p1490) target = $region106
        $region105: #{tpu_custom_call.1} parent=101 // pred_region
          %s1493 = sand.u32 %s204, 1
          %s1494 = scalar_lea.sflag [#allocation7], %s1493
          %s1495 = sand.u32 %s204, 1
          %s1496 = smul.addr %s1495, 64
          %s1497 = scalar_lea.vmem [#allocation8], %s1496
          %1498 = dma.done %s1494, 1024
        $region106: #{tpu_custom_call.1} parent=101 // pred_fallthru
          _
      $region102: #{tpu_custom_call.1} parent=5 // pred_fallthru
        _
    $region6: #{tpu_custom_call.1} parent=1 // loop_footer
      %s21 = sadd.s32 1, %s17
    $region7: #{tpu_custom_call.1} parent=1 // loop_footer_branch
      %16 = sbr.rel target = $region3
    $region8: #{tpu_custom_call.1} parent=1 // loop_exit
      _
    %1499 = vsyncpa [#allocation6], 1
    %s1500 = scalar_lea.sflag [#allocation6], 1
    %1501 = vsyncpa %s1500, 1
    %1502 = vsyncpa [#allocation7], 1
    %s1503 = scalar_lea.sflag [#allocation7], 1
    %1504 = vsyncpa %s1503, 1

</llo_original>
